<compile_context>
chip_gen: v5e
topology: v5e:2x2
jax: 0.10.0
libtpu: 0.0.40
codegen_flags: <defaults>
</compile_context>

<pallas_src>
import functools
import numpy as np
import jax
import jax.numpy as jnp
from jax import lax
from jax.experimental import pallas as pl
from jax.experimental.pallas import tpu as pltpu


# ----------------------------------------------------------------------------
# helpers
# ----------------------------------------------------------------------------
def get_pad(in_, ksize, stride, atrous=1):
    out_ = np.ceil(float(in_) / stride)
    return int(((out_ - 1) * stride + atrous * (ksize - 1) + 1 - in_) / 2)


def _round_up(x, m):
    return (x + m - 1) // m * m


# ----------------------------------------------------------------------------
# Kernel 1: fused 3x3 / stride-2 conv  (phase-concatenated input, grouped-K)
# ----------------------------------------------------------------------------
def _conv3x3s2_kernel(x_ref, xh_ref, w_ref, b_ref, o_ref, *, tr, wo, neg):
    """Fused 3x3 stride-2 conv block: bias + LeakyReLU included.

    x_ref : (tr, Wh, 4C)  bf16  -- phase-concat rows [i*tr, i*tr+tr)
                                   channel group g = 2a + b holds x_pad[2i+a, 2j+b]
    xh_ref: (1,  Wh, 4C)  bf16  -- halo row  i*tr + tr
    w_ref : (9C, TO)      bf16  -- packed K-grouped weights (see wrapper)
    b_ref : (1, TO)       f32
    o_ref : (tr, wo, TO)  bf16
    """
    c = x_ref.shape[-1] // 4
    W = w_ref[...]                                   # (9C, TO)
    w_a0  = W[0 * c:4 * c]     # taps (0,0),(0,1),(1,0),(1,1)  -> groups 0..3
    w_a1a = W[4 * c:5 * c]     # tap  (0,2)                    -> group 0
    w_a1b = W[5 * c:6 * c]     # tap  (1,2)                    -> group 2
    w_b0  = W[6 * c:8 * c]     # taps (2,0),(2,1)              -> groups 0..1
    w_b1  = W[8 * c:9 * c]     # tap  (2,2)                    -> group 0
    bias = b_ref[...]                                # (1, TO) f32

    def dot(a, b):
        return jnp.dot(a, b, preferred_element_type=jnp.float32)

    for r in range(tr):
        row0 = x_ref[r]                                          # (Wh, 4C)
        row1 = x_ref[r + 1] if r + 1 < tr else xh_ref[0]         # (Wh, 4C)

        # contributions landing on output column j  (kernel cols q in {0,1})
        a_acc = dot(row0, w_a0)                                  # dv=0
        a_acc += dot(row1[:, 0:2 * c], w_b0)                     # dv=1
        # contributions landing on output column j-1 (kernel col q == 2)
        b_acc = dot(row0[:, 0:c], w_a1a)                         # dv=0, a=0
        b_acc += dot(row0[:, 2 * c:3 * c], w_a1b)                # dv=0, a=1
        b_acc += dot(row1[:, 0:c], w_b1)                         # dv=1

        y = a_acc[:wo, :] + b_acc[1:wo + 1, :] + bias            # (wo, TO) f32
        y = jnp.where(y >= 0.0, y, neg * y)                      # LeakyReLU(0.2)
        o_ref[r] = y.astype(o_ref.dtype)


def conv3x3s2_pallas(x, w, b, *, negative_slope=0.2):
    """x: (N, H, W, C) bf16 (H, W even), w: (3,3,C,O) HWIO bf16, b: (O,) f32.

    Stride-2, padding-1 conv + LeakyReLU, NHWC, fully fused (no im2col in HBM).
    """
    N, H, Wd, C = x.shape
    kh, kw, _, O = w.shape
    assert kh == 3 and kw == 3
    Ho, Wo = H // 2, Wd // 2
    Hh, Wh = Ho + 1, Wo + 1

    TR = 8
    while Ho % TR:
        TR //= 2
    TO = O if O <= 256 else 256
    if O % TO:
        TO = O

    # pack weights grouped along K to match the kernel's channel-group order
    order = [(0, 0), (0, 1), (1, 0), (1, 1),      # A0 : dv=0, dh=0
             (0, 2), (1, 2),                      # A1 : dv=0, dh=1
             (2, 0), (2, 1),                      # B0 : dv=1, dh=0
             (2, 2)]                              # B1 : dv=1, dh=1
    w_packed = jnp.concatenate([w[p, q] for (p, q) in order],
                               axis=0).astype(jnp.bfloat16)        # (9C, O)
    bias2d = b.reshape(1, O).astype(jnp.float32)

    grid = (Ho // TR, O // TO)
    kernel = functools.partial(_conv3x3s2_kernel, tr=TR, wo=Wo,
                               neg=negative_slope)

    outs = []
    for n in range(N):
        # spatial pad (pad=1) then phase-concat (space-to-depth for stride 2)
        xp = jnp.pad(x[n], ((1, 1), (1, 1), (0, 0)))             # (2Hh, 2Wh, C)
        xg = (xp.reshape(Hh, 2, Wh, 2, C)
                .transpose(0, 2, 1, 3, 4)
                .reshape(Hh, Wh, 4 * C))           # channel group g = 2a + b

        out = pl.pallas_call(
            kernel,
            out_shape=jax.ShapeDtypeStruct((Ho, Wo, O), x.dtype),
            grid_spec=pltpu.PrefetchScalarGridSpec(
                num_scalar_prefetch=0,
                grid=grid,
                in_specs=[
                    # main row-slab: rows [i*TR, i*TR + TR)
                    pl.BlockSpec((TR, Wh, 4 * C), lambda i, j: (i, 0, 0)),
                    # one-row halo: row i*TR + TR
                    pl.BlockSpec((1, Wh, 4 * C),
                                 lambda i, j: ((i + 1) * TR, 0, 0)),
                    pl.BlockSpec((9 * C, TO), lambda i, j: (0, j)),
                    pl.BlockSpec((1, TO), lambda i, j: (0, j)),
                ],
                out_specs=pl.BlockSpec((TR, Wo, TO), lambda i, j: (i, 0, j)),
            ),
            compiler_params=pltpu.CompilerParams(
                dimension_semantics=("parallel", "parallel")),
        )(xg, xg, w_packed, bias2d)
        outs.append(out)
    return jnp.stack(outs, axis=0)


# ----------------------------------------------------------------------------
# Kernel 2: tiled  A @ B + bias  with fused activation (bf16 in, f32 acc)
# ----------------------------------------------------------------------------
def _mm_bias_act_kernel(a_ref, b_ref, bias_ref, o_ref, acc_ref, *, activation):
    k = pl.program_id(2)

    @pl.when(k == 0)
    def _():
        acc_ref[...] = jnp.zeros_like(acc_ref)

    acc_ref[...] += jnp.dot(a_ref[...], b_ref[...],
                            preferred_element_type=jnp.float32)

    @pl.when(k == pl.num_programs(2) - 1)
    def _():
        y = acc_ref[...] + bias_ref[...]               # (tm, tn) + (1, tn)
        if activation == "leaky":                      # LeakyReLU(0.2)
            y = jnp.where(y >= 0.0, y, 0.2 * y)
        elif activation == "sigmoid":
            y = 1.0 / (1.0 + jnp.exp(-y))
        o_ref[...] = y.astype(o_ref.dtype)


def matmul_bias_act(a, b, bias, activation=None, out_dtype=jnp.bfloat16):
    """a: (M, K), b: (K, N), bias: (N,) -> act(a @ b + bias) : (M, N)."""
    M, K = a.shape
    K2, N = b.shape
    assert K == K2

    a = a.astype(jnp.bfloat16)
    b = b.astype(jnp.bfloat16)
    bias2d = bias.reshape(1, N).astype(jnp.float32)

    # --- tile selection: exact-dividing blocks, no operand padding ---
    if N <= 256:
        tn = N                                          # full-dim block
    elif N % 256 == 0:
        tn = 256
    elif N % 128 == 0:
        tn = 128
    else:
        tn = N

    if K <= 2304:
        tk = K                                          # full-K block
    else:
        tk = K
        for cand in (2048, 1536, 1152, 1024, 768, 640, 512, 384, 256, 128):
            if K % cand == 0:
                tk = cand
                break

    cap = max(8, min(4096, (2 * 1024 * 1024) // (2 * tk)))   # ~2 MiB A block
    tm = None
    for cand in (4096, 2048, 1024, 512, 256, 128, 64, 32, 16, 8):
        if cand <= cap and M % cand == 0:
            tm = cand
            break
    if tm is None:                                      # ragged M: pad rows only
        tm = min(cap, 128)
        Mp = _round_up(M, tm)
        a = jnp.pad(a, ((0, Mp - M), (0, 0)))
    else:
        Mp = M

    grid = (Mp // tm, N // tn, K // tk)
    out = pl.pallas_call(
        functools.partial(_mm_bias_act_kernel, activation=activation),
        out_shape=jax.ShapeDtypeStruct((Mp, N), out_dtype),
        grid_spec=pltpu.PrefetchScalarGridSpec(
            num_scalar_prefetch=0,
            grid=grid,
            in_specs=[
                pl.BlockSpec((tm, tk), lambda i, j, k: (i, k)),
                pl.BlockSpec((tk, tn), lambda i, j, k: (k, j)),
                pl.BlockSpec((1, tn), lambda i, j, k: (0, j)),
            ],
            out_specs=pl.BlockSpec((tm, tn), lambda i, j, k: (i, j)),
            scratch_shapes=[pltpu.VMEM((tm, tn), jnp.float32)],
        ),
        compiler_params=pltpu.CompilerParams(
            dimension_semantics=("parallel", "parallel", "arbitrary")),
    )(a, b, bias2d)
    if Mp != M:
        out = out[:M]
    return out


def conv2d_im2col_pallas(x, w, b, stride, padding, activation,
                         out_dtype=jnp.bfloat16):
    """Generic conv via im2col + Pallas matmul.  x: (N,H,W,C), w: (kh,kw,C,O)."""
    # TODO(synk): layer 1 (5x5 / stride-1 / C=4) still materializes its im2col
    # patches in HBM; fusing it needs a lane-friendly layout for C=4 and is left
    # out to keep the kernel set small.
    N, H, W, C = x.shape
    kh, kw, _, O = w.shape
    Ho = (H + 2 * padding - kh) // stride + 1
    Wo = (W + 2 * padding - kw) // stride + 1

    xp = jnp.pad(x, ((0, 0), (padding, padding), (padding, padding), (0, 0)))
    cols = []
    for p in range(kh):
        for q in range(kw):
            cols.append(xp[:, p:p + (Ho - 1) * stride + 1:stride,
                           q:q + (Wo - 1) * stride + 1:stride, :])
    patches = jnp.stack(cols, axis=3)                  # (N, Ho, Wo, kh*kw, C)
    a = patches.reshape(N * Ho * Wo, kh * kw * C)      # (p, q, c) ordering
    bmat = w.reshape(kh * kw * C, O)                   # same ordering
    y = matmul_bias_act(a, bmat, b, activation=activation, out_dtype=out_dtype)
    return y.reshape(N, Ho, Wo, O)


# ----------------------------------------------------------------------------
# Kernel 3: shrink conv (8x8 valid conv -> 1x1) as a dot + sigmoid reduction
# ----------------------------------------------------------------------------
def _shrink_kernel(x_ref, w_ref, b_ref, o_ref):
    prod = x_ref[...].astype(jnp.float32) * w_ref[...].astype(jnp.float32)
    s = jnp.sum(prod) + b_ref[0, 0]
    o_ref[...] = (1.0 / (1.0 + jnp.exp(-s))).reshape(1, 1)


def shrink_sigmoid_pallas(x, w, b):
    """x: (N, H, W, C), w: (kh, kw, C, 1), b: (1,) -> (N, 1, 1, 1) f32."""
    N, H, W, C = x.shape
    kh, kw, _, O = w.shape
    if not (H == kh and W == kw and O == 1):
        return conv2d_im2col_pallas(x, w, b, 1, 0, activation="sigmoid",
                                    out_dtype=jnp.float32)
    K = kh * kw * C
    shape2d = (K // 128, 128) if K % 128 == 0 else (1, K)
    wf = w.reshape(shape2d).astype(jnp.bfloat16)
    b2 = b.reshape(1, 1).astype(jnp.float32)

    outs = []
    for n in range(N):
        xf = x[n].reshape(shape2d).astype(jnp.bfloat16)
        o = pl.pallas_call(
            _shrink_kernel,
            out_shape=jax.ShapeDtypeStruct((1, 1), jnp.float32),
            grid_spec=pltpu.PrefetchScalarGridSpec(
                num_scalar_prefetch=0,
                grid=(1,),
                in_specs=[pl.BlockSpec(shape2d, lambda i: (0, 0)),
                          pl.BlockSpec(shape2d, lambda i: (0, 0)),
                          pl.BlockSpec((1, 1), lambda i: (0, 0))],
                out_specs=pl.BlockSpec((1, 1), lambda i: (0, 0)),
            ),
        )(xf, wf, b2)
        outs.append(o.reshape(1, 1, 1))
    return jnp.stack(outs, axis=0)                     # (N, 1, 1, 1)


# ----------------------------------------------------------------------------
# parameter init (deterministic, mirrors the PyTorch module's __init__)
# ----------------------------------------------------------------------------
def _init_conv_params(key, out_ch, in_ch, ksize):
    kw_key, kb_key, ku_key = jax.random.split(key, 3)
    fan_in = in_ch * ksize * ksize
    # kaiming_normal_ -> N(0, sqrt(2 / fan_in))
    w = jax.random.normal(kw_key, (out_ch, in_ch, ksize, ksize),
                          jnp.float32) * jnp.sqrt(2.0 / fan_in)
    bound = 1.0 / np.sqrt(fan_in)
    b = jax.random.uniform(kb_key, (out_ch,), jnp.float32, -bound, bound)
    return w, b, ku_key


def _spectral_normalize(w, u_key, n_iter=1, eps=1e-12):
    """W / sigma(W) with power iteration on the (O, C*kh*kw) matrix."""
    O = w.shape[0]
    wm = w.reshape(O, -1)
    u = jax.random.normal(u_key, (O,), jnp.float32)
    u = u / (jnp.linalg.norm(u) + eps)
    v = None
    for _ in range(n_iter):
        v = wm.T @ u
        v = v / (jnp.linalg.norm(v) + eps)
        u = wm @ v
        u = u / (jnp.linalg.norm(u) + eps)
    sigma = u @ (wm @ v)
    return w / sigma


class Discriminator:
    def __init__(self, input_channels, key):
        cnum = 32
        specs = [
            (input_channels, 2 * cnum, 5, 1, 2),
            (2 * cnum, 2 * cnum, 3, 2, get_pad(256, 4, 2)),
            (2 * cnum, 4 * cnum, 3, 2, get_pad(128, 4, 2)),
            (4 * cnum, 8 * cnum, 3, 2, get_pad(64, 4, 2)),
            (8 * cnum, 16 * cnum, 3, 2, get_pad(32, 4, 2)),
            (16 * cnum, 16 * cnum, 3, 2, get_pad(16, 4, 2)),
            (16 * cnum, 16 * cnum, 3, 2, get_pad(8, 4, 2)),
        ]
        self.layers = []
        for (ci, co, ks, st, pd) in specs:
            key, sub = jax.random.split(key)
            w, bvec, u_key = _init_conv_params(sub, co, ci, ks)   # (O,C,kh,kw)
            w = _spectral_normalize(w, u_key)                     # SN on SNConv
            w_hwio = jnp.transpose(w, (2, 3, 1, 0)).astype(jnp.bfloat16)
            self.layers.append((w_hwio, bvec.astype(jnp.float32), ks, st, pd))
        key, sub = jax.random.split(key)
        sw, sb, _ = _init_conv_params(sub, 1, 16 * cnum, 8)
        self.shrink_w = jnp.transpose(sw, (2, 3, 1, 0)).astype(jnp.bfloat16)
        self.shrink_b = sb.astype(jnp.float32)

    def __call__(self, x_nchw):
        # go channels-last (NHWC) + bf16 once, stay there for the whole net
        x = jnp.transpose(x_nchw, (0, 2, 3, 1)).astype(jnp.bfloat16)
        for (w, b, ks, st, pd) in self.layers:
            N, H, W, C = x.shape
            if ks == 3 and st == 2 and pd == 1 and H % 2 == 0 and W % 2 == 0:
                x = conv3x3s2_pallas(x, w, b)                 # fused conv kernel
            else:
                x = conv2d_im2col_pallas(x, w, b, st, pd, activation="leaky")
        y = shrink_sigmoid_pallas(x, self.shrink_w, self.shrink_b)  # (N,1,1,1)
        return jnp.transpose(y, (0, 3, 1, 2))                 # NCHW


# ----------------------------------------------------------------------------
# reference (test oracle only) for the fused stride-2 conv kernel
# ----------------------------------------------------------------------------
def _conv_ref(x, w, b, stride, padding, neg=0.2):
    y = lax.conv_general_dilated(
        x.astype(jnp.float32), w.astype(jnp.float32),
        window_strides=(stride, stride),
        padding=((padding, padding), (padding, padding)),
        dimension_numbers=("NHWC", "HWIO", "NHWC"))
    y = y + b.reshape(1, 1, 1, -1)
    return jnp.where(y >= 0.0, y, neg * y)


# ----------------------------------------------------------------------------
if __name__ == "__main__":
    key = jax.random.PRNGKey(0)
    pkey, xkey, tkey = jax.random.split(key, 3)

    # --- small numerical self-check of the fused stride-2 conv kernel ---
    k1, k2, k3 = jax.random.split(tkey, 3)
    xt = jax.random.normal(k1, (1, 16, 16, 32), jnp.float32).astype(jnp.bfloat16)
    wt = (jax.random.normal(k2, (3, 3, 32, 64), jnp.float32) * 0.1
          ).astype(jnp.bfloat16)
    bt = jax.random.normal(k3, (64,), jnp.float32) * 0.1
    got = np.asarray(conv3x3s2_pallas(xt, wt, bt).astype(jnp.float32))
    want = np.asarray(_conv_ref(xt, wt, bt, 2, 1))
    np.testing.assert_allclose(got, want, atol=3e-2, rtol=3e-2)

    input_channels = 4
    # smallest "nice" spatial size the architecture supports (six stride-2
    # convs feeding a kernel-8 conv): 512 -> final 1x1 output.
    x = jax.random.normal(xkey, (1, input_channels, 512, 512), jnp.float32)

    model = Discriminator(input_channels, pkey)
    fwd = jax.jit(lambda inp: model(inp))
    out = jax.block_until_ready(fwd(x))

    assert out.shape == (1, 1, 1, 1), out.shape
    out_f = jnp.asarray(out, jnp.float32)
    assert bool(jnp.all(jnp.isfinite(out_f)))
    assert bool(jnp.all((out_f >= 0.0) & (out_f <= 1.0)))
    print("KERNEL_OK")
</pallas_src>

<mosaic_0001>
module attributes {stable_mosaic.version = 11 : i64} {
  func.func @_conv3x3s2_kernel(%arg0: i32, %arg1: i32, %arg2: memref<8x9x128xbf16, #tpu.memory_space<vmem>>, %arg3: memref<1x9x128xbf16, #tpu.memory_space<vmem>>, %arg4: memref<288x64xbf16, #tpu.memory_space<vmem>>, %arg5: memref<1x64xf32, #tpu.memory_space<vmem>>, %arg6: memref<8x8x64xbf16, #tpu.memory_space<vmem>>) attributes {dimension_semantics = [#tpu.dimension_semantics<parallel>, #tpu.dimension_semantics<parallel>], iteration_bounds = array<i64: 1, 1>, scalar_prefetch = 0 : i64, scratch_operands = 0 : i64, tpu.core_type = #tpu.core_type<tc>, window_params = [{transform_indices = @transform_0, window_bounds = array<i64: 8, 9, 128>}, {transform_indices = @transform_1, window_bounds = array<i64: 1, 9, 128>}, {transform_indices = @transform_2, window_bounds = array<i64: 288, 64>}, {transform_indices = @transform_3, window_bounds = array<i64: 1, 64>}, {transform_indices = @transform_4, window_bounds = array<i64: 8, 8, 64>}]} {
    %c0 = arith.constant 0 : index
    %c0_0 = arith.constant 0 : index
    %0 = vector.load %arg4[%c0, %c0_0] : memref<288x64xbf16, #tpu.memory_space<vmem>>, vector<288x64xbf16>
    %1 = vector.extract_strided_slice %0 {offsets = [0, 0], sizes = [128, 64], strides = [1, 1]} : vector<288x64xbf16> to vector<128x64xbf16>
    %2 = vector.extract_strided_slice %0 {offsets = [128, 0], sizes = [32, 64], strides = [1, 1]} : vector<288x64xbf16> to vector<32x64xbf16>
    %3 = vector.extract_strided_slice %0 {offsets = [160, 0], sizes = [32, 64], strides = [1, 1]} : vector<288x64xbf16> to vector<32x64xbf16>
    %4 = vector.extract_strided_slice %0 {offsets = [192, 0], sizes = [64, 64], strides = [1, 1]} : vector<288x64xbf16> to vector<64x64xbf16>
    %5 = vector.extract_strided_slice %0 {offsets = [256, 0], sizes = [32, 64], strides = [1, 1]} : vector<288x64xbf16> to vector<32x64xbf16>
    %c0_1 = arith.constant 0 : index
    %c0_2 = arith.constant 0 : index
    %6 = vector.load %arg5[%c0_1, %c0_2] : memref<1x64xf32, #tpu.memory_space<vmem>>, vector<1x64xf32>
    %c0_3 = arith.constant 0 : index
    %c0_4 = arith.constant 0 : index
    %c0_5 = arith.constant 0 : index
    %7 = vector.load %arg2[%c0_3, %c0_4, %c0_5] : memref<8x9x128xbf16, #tpu.memory_space<vmem>>, vector<1x9x128xbf16>
    %8 = vector.shape_cast %7 : vector<1x9x128xbf16> to vector<9x128xbf16>
    %c1 = arith.constant 1 : index
    %c0_6 = arith.constant 0 : index
    %c0_7 = arith.constant 0 : index
    %9 = vector.load %arg2[%c1, %c0_6, %c0_7] : memref<8x9x128xbf16, #tpu.memory_space<vmem>>, vector<1x9x128xbf16>
    %10 = vector.shape_cast %9 : vector<1x9x128xbf16> to vector<9x128xbf16>
    %cst = arith.constant dense<0.000000e+00> : vector<9x64xf32>
    %11 = tpu.matmul %8, %1, %cst {dimension_numbers = #tpu.dot_dimension_numbers<[1], [0], [0], [1], [0, 0, 1, 1], [], []>} : vector<9x128xbf16>, vector<128x64xbf16>, vector<9x64xf32> -> vector<9x64xf32>
    %12 = vector.extract_strided_slice %10 {offsets = [0, 0], sizes = [9, 64], strides = [1, 1]} : vector<9x128xbf16> to vector<9x64xbf16>
    %cst_8 = arith.constant dense<0.000000e+00> : vector<9x64xf32>
    %13 = tpu.matmul %12, %4, %cst_8 {dimension_numbers = #tpu.dot_dimension_numbers<[1], [0], [0], [1], [0, 0, 1, 1], [], []>} : vector<9x64xbf16>, vector<64x64xbf16>, vector<9x64xf32> -> vector<9x64xf32>
    %14 = arith.addf %11, %13 : vector<9x64xf32>
    %15 = vector.extract_strided_slice %8 {offsets = [0, 0], sizes = [9, 32], strides = [1, 1]} : vector<9x128xbf16> to vector<9x32xbf16>
    %cst_9 = arith.constant dense<0.000000e+00> : vector<9x64xf32>
    %16 = tpu.matmul %15, %2, %cst_9 {dimension_numbers = #tpu.dot_dimension_numbers<[1], [0], [0], [1], [0, 0, 1, 1], [], []>} : vector<9x32xbf16>, vector<32x64xbf16>, vector<9x64xf32> -> vector<9x64xf32>
    %17 = vector.extract_strided_slice %8 {offsets = [0, 64], sizes = [9, 32], strides = [1, 1]} : vector<9x128xbf16> to vector<9x32xbf16>
    %cst_10 = arith.constant dense<0.000000e+00> : vector<9x64xf32>
    %18 = tpu.matmul %17, %3, %cst_10 {dimension_numbers = #tpu.dot_dimension_numbers<[1], [0], [0], [1], [0, 0, 1, 1], [], []>} : vector<9x32xbf16>, vector<32x64xbf16>, vector<9x64xf32> -> vector<9x64xf32>
    %19 = arith.addf %16, %18 : vector<9x64xf32>
    %20 = vector.extract_strided_slice %10 {offsets = [0, 0], sizes = [9, 32], strides = [1, 1]} : vector<9x128xbf16> to vector<9x32xbf16>
    %cst_11 = arith.constant dense<0.000000e+00> : vector<9x64xf32>
    %21 = tpu.matmul %20, %5, %cst_11 {dimension_numbers = #tpu.dot_dimension_numbers<[1], [0], [0], [1], [0, 0, 1, 1], [], []>} : vector<9x32xbf16>, vector<32x64xbf16>, vector<9x64xf32> -> vector<9x64xf32>
    %22 = arith.addf %19, %21 : vector<9x64xf32>
    %23 = vector.extract_strided_slice %14 {offsets = [0, 0], sizes = [8, 64], strides = [1, 1]} : vector<9x64xf32> to vector<8x64xf32>
    %24 = vector.extract_strided_slice %22 {offsets = [1, 0], sizes = [8, 64], strides = [1, 1]} : vector<9x64xf32> to vector<8x64xf32>
    %25 = arith.addf %23, %24 : vector<8x64xf32>
    %26 = vector.broadcast %6 : vector<1x64xf32> to vector<8x64xf32>
    %27 = arith.addf %25, %26 : vector<8x64xf32>
    %cst_12 = arith.constant 0.000000e+00 : f32
    %28 = vector.broadcast %cst_12 : f32 to vector<8x64xf32>
    %29 = arith.cmpf oge, %27, %28 : vector<8x64xf32>
    %cst_13 = arith.constant 2.000000e-01 : f32
    %30 = vector.broadcast %cst_13 : f32 to vector<8x64xf32>
    %31 = arith.mulf %30, %27 : vector<8x64xf32>
    %32 = arith.select %29, %27, %31 : vector<8x64xi1>, vector<8x64xf32>
    %33 = arith.truncf %32 : vector<8x64xf32> to vector<8x64xbf16>
    %c0_14 = arith.constant 0 : index
    %c0_15 = arith.constant 0 : index
    %c0_16 = arith.constant 0 : index
    %34 = vector.load %arg6[%c0_14, %c0_15, %c0_16] : memref<8x8x64xbf16, #tpu.memory_space<vmem>>, vector<1x8x64xbf16>
    %35 = vector.shape_cast %34 : vector<1x8x64xbf16> to vector<8x64xbf16>
    %36 = vector.shape_cast %33 : vector<8x64xbf16> to vector<1x8x64xbf16>
    tpu.vector_store %arg6[%c0_14, %c0_15, %c0_16], %36 {strides = array<i32>} : memref<8x8x64xbf16, #tpu.memory_space<vmem>>, vector<1x8x64xbf16>,
    %c1_17 = arith.constant 1 : index
    %c0_18 = arith.constant 0 : index
    %c0_19 = arith.constant 0 : index
    %37 = vector.load %arg2[%c1_17, %c0_18, %c0_19] : memref<8x9x128xbf16, #tpu.memory_space<vmem>>, vector<1x9x128xbf16>
    %38 = vector.shape_cast %37 : vector<1x9x128xbf16> to vector<9x128xbf16>
    %c2 = arith.constant 2 : index
    %c0_20 = arith.constant 0 : index
    %c0_21 = arith.constant 0 : index
    %39 = vector.load %arg2[%c2, %c0_20, %c0_21] : memref<8x9x128xbf16, #tpu.memory_space<vmem>>, vector<1x9x128xbf16>
    %40 = vector.shape_cast %39 : vector<1x9x128xbf16> to vector<9x128xbf16>
    %cst_22 = arith.constant dense<0.000000e+00> : vector<9x64xf32>
    %41 = tpu.matmul %38, %1, %cst_22 {dimension_numbers = #tpu.dot_dimension_numbers<[1], [0], [0], [1], [0, 0, 1, 1], [], []>} : vector<9x128xbf16>, vector<128x64xbf16>, vector<9x64xf32> -> vector<9x64xf32>
    %42 = vector.extract_strided_slice %40 {offsets = [0, 0], sizes = [9, 64], strides = [1, 1]} : vector<9x128xbf16> to vector<9x64xbf16>
    %cst_23 = arith.constant dense<0.000000e+00> : vector<9x64xf32>
    %43 = tpu.matmul %42, %4, %cst_23 {dimension_numbers = #tpu.dot_dimension_numbers<[1], [0], [0], [1], [0, 0, 1, 1], [], []>} : vector<9x64xbf16>, vector<64x64xbf16>, vector<9x64xf32> -> vector<9x64xf32>
    %44 = arith.addf %41, %43 : vector<9x64xf32>
    %45 = vector.extract_strided_slice %38 {offsets = [0, 0], sizes = [9, 32], strides = [1, 1]} : vector<9x128xbf16> to vector<9x32xbf16>
    %cst_24 = arith.constant dense<0.000000e+00> : vector<9x64xf32>
    %46 = tpu.matmul %45, %2, %cst_24 {dimension_numbers = #tpu.dot_dimension_numbers<[1], [0], [0], [1], [0, 0, 1, 1], [], []>} : vector<9x32xbf16>, vector<32x64xbf16>, vector<9x64xf32> -> vector<9x64xf32>
    %47 = vector.extract_strided_slice %38 {offsets = [0, 64], sizes = [9, 32], strides = [1, 1]} : vector<9x128xbf16> to vector<9x32xbf16>
    %cst_25 = arith.constant dense<0.000000e+00> : vector<9x64xf32>
    %48 = tpu.matmul %47, %3, %cst_25 {dimension_numbers = #tpu.dot_dimension_numbers<[1], [0], [0], [1], [0, 0, 1, 1], [], []>} : vector<9x32xbf16>, vector<32x64xbf16>, vector<9x64xf32> -> vector<9x64xf32>
    %49 = arith.addf %46, %48 : vector<9x64xf32>
    %50 = vector.extract_strided_slice %40 {offsets = [0, 0], sizes = [9, 32], strides = [1, 1]} : vector<9x128xbf16> to vector<9x32xbf16>
    %cst_26 = arith.constant dense<0.000000e+00> : vector<9x64xf32>
    %51 = tpu.matmul %50, %5, %cst_26 {dimension_numbers = #tpu.dot_dimension_numbers<[1], [0], [0], [1], [0, 0, 1, 1], [], []>} : vector<9x32xbf16>, vector<32x64xbf16>, vector<9x64xf32> -> vector<9x64xf32>
    %52 = arith.addf %49, %51 : vector<9x64xf32>
    %53 = vector.extract_strided_slice %44 {offsets = [0, 0], sizes = [8, 64], strides = [1, 1]} : vector<9x64xf32> to vector<8x64xf32>
    %54 = vector.extract_strided_slice %52 {offsets = [1, 0], sizes = [8, 64], strides = [1, 1]} : vector<9x64xf32> to vector<8x64xf32>
    %55 = arith.addf %53, %54 : vector<8x64xf32>
    %56 = vector.broadcast %6 : vector<1x64xf32> to vector<8x64xf32>
    %57 = arith.addf %55, %56 : vector<8x64xf32>
    %cst_27 = arith.constant 0.000000e+00 : f32
    %58 = vector.broadcast %cst_27 : f32 to vector<8x64xf32>
    %59 = arith.cmpf oge, %57, %58 : vector<8x64xf32>
    %cst_28 = arith.constant 2.000000e-01 : f32
    %60 = vector.broadcast %cst_28 : f32 to vector<8x64xf32>
    %61 = arith.mulf %60, %57 : vector<8x64xf32>
    %62 = arith.select %59, %57, %61 : vector<8x64xi1>, vector<8x64xf32>
    %63 = arith.truncf %62 : vector<8x64xf32> to vector<8x64xbf16>
    %c1_29 = arith.constant 1 : index
    %c0_30 = arith.constant 0 : index
    %c0_31 = arith.constant 0 : index
    %64 = vector.load %arg6[%c1_29, %c0_30, %c0_31] : memref<8x8x64xbf16, #tpu.memory_space<vmem>>, vector<1x8x64xbf16>
    %65 = vector.shape_cast %64 : vector<1x8x64xbf16> to vector<8x64xbf16>
    %66 = vector.shape_cast %63 : vector<8x64xbf16> to vector<1x8x64xbf16>
    tpu.vector_store %arg6[%c1_29, %c0_30, %c0_31], %66 {strides = array<i32>} : memref<8x8x64xbf16, #tpu.memory_space<vmem>>, vector<1x8x64xbf16>,
    %c2_32 = arith.constant 2 : index
    %c0_33 = arith.constant 0 : index
    %c0_34 = arith.constant 0 : index
    %67 = vector.load %arg2[%c2_32, %c0_33, %c0_34] : memref<8x9x128xbf16, #tpu.memory_space<vmem>>, vector<1x9x128xbf16>
    %68 = vector.shape_cast %67 : vector<1x9x128xbf16> to vector<9x128xbf16>
    %c3 = arith.constant 3 : index
    %c0_35 = arith.constant 0 : index
    %c0_36 = arith.constant 0 : index
    %69 = vector.load %arg2[%c3, %c0_35, %c0_36] : memref<8x9x128xbf16, #tpu.memory_space<vmem>>, vector<1x9x128xbf16>
    %70 = vector.shape_cast %69 : vector<1x9x128xbf16> to vector<9x128xbf16>
    %cst_37 = arith.constant dense<0.000000e+00> : vector<9x64xf32>
    %71 = tpu.matmul %68, %1, %cst_37 {dimension_numbers = #tpu.dot_dimension_numbers<[1], [0], [0], [1], [0, 0, 1, 1], [], []>} : vector<9x128xbf16>, vector<128x64xbf16>, vector<9x64xf32> -> vector<9x64xf32>
    %72 = vector.extract_strided_slice %70 {offsets = [0, 0], sizes = [9, 64], strides = [1, 1]} : vector<9x128xbf16> to vector<9x64xbf16>
    %cst_38 = arith.constant dense<0.000000e+00> : vector<9x64xf32>
    %73 = tpu.matmul %72, %4, %cst_38 {dimension_numbers = #tpu.dot_dimension_numbers<[1], [0], [0], [1], [0, 0, 1, 1], [], []>} : vector<9x64xbf16>, vector<64x64xbf16>, vector<9x64xf32> -> vector<9x64xf32>
    %74 = arith.addf %71, %73 : vector<9x64xf32>
    %75 = vector.extract_strided_slice %68 {offsets = [0, 0], sizes = [9, 32], strides = [1, 1]} : vector<9x128xbf16> to vector<9x32xbf16>
    %cst_39 = arith.constant dense<0.000000e+00> : vector<9x64xf32>
    %76 = tpu.matmul %75, %2, %cst_39 {dimension_numbers = #tpu.dot_dimension_numbers<[1], [0], [0], [1], [0, 0, 1, 1], [], []>} : vector<9x32xbf16>, vector<32x64xbf16>, vector<9x64xf32> -> vector<9x64xf32>
    %77 = vector.extract_strided_slice %68 {offsets = [0, 64], sizes = [9, 32], strides = [1, 1]} : vector<9x128xbf16> to vector<9x32xbf16>
    %cst_40 = arith.constant dense<0.000000e+00> : vector<9x64xf32>
    %78 = tpu.matmul %77, %3, %cst_40 {dimension_numbers = #tpu.dot_dimension_numbers<[1], [0], [0], [1], [0, 0, 1, 1], [], []>} : vector<9x32xbf16>, vector<32x64xbf16>, vector<9x64xf32> -> vector<9x64xf32>
    %79 = arith.addf %76, %78 : vector<9x64xf32>
    %80 = vector.extract_strided_slice %70 {offsets = [0, 0], sizes = [9, 32], strides = [1, 1]} : vector<9x128xbf16> to vector<9x32xbf16>
    %cst_41 = arith.constant dense<0.000000e+00> : vector<9x64xf32>
    %81 = tpu.matmul %80, %5, %cst_41 {dimension_numbers = #tpu.dot_dimension_numbers<[1], [0], [0], [1], [0, 0, 1, 1], [], []>} : vector<9x32xbf16>, vector<32x64xbf16>, vector<9x64xf32> -> vector<9x64xf32>
    %82 = arith.addf %79, %81 : vector<9x64xf32>
    %83 = vector.extract_strided_slice %74 {offsets = [0, 0], sizes = [8, 64], strides = [1, 1]} : vector<9x64xf32> to vector<8x64xf32>
    %84 = vector.extract_strided_slice %82 {offsets = [1, 0], sizes = [8, 64], strides = [1, 1]} : vector<9x64xf32> to vector<8x64xf32>
    %85 = arith.addf %83, %84 : vector<8x64xf32>
    %86 = vector.broadcast %6 : vector<1x64xf32> to vector<8x64xf32>
    %87 = arith.addf %85, %86 : vector<8x64xf32>
    %cst_42 = arith.constant 0.000000e+00 : f32
    %88 = vector.broadcast %cst_42 : f32 to vector<8x64xf32>
    %89 = arith.cmpf oge, %87, %88 : vector<8x64xf32>
    %cst_43 = arith.constant 2.000000e-01 : f32
    %90 = vector.broadcast %cst_43 : f32 to vector<8x64xf32>
    %91 = arith.mulf %90, %87 : vector<8x64xf32>
    %92 = arith.select %89, %87, %91 : vector<8x64xi1>, vector<8x64xf32>
    %93 = arith.truncf %92 : vector<8x64xf32> to vector<8x64xbf16>
    %c2_44 = arith.constant 2 : index
    %c0_45 = arith.constant 0 : index
    %c0_46 = arith.constant 0 : index
    %94 = vector.load %arg6[%c2_44, %c0_45, %c0_46] : memref<8x8x64xbf16, #tpu.memory_space<vmem>>, vector<1x8x64xbf16>
    %95 = vector.shape_cast %94 : vector<1x8x64xbf16> to vector<8x64xbf16>
    %96 = vector.shape_cast %93 : vector<8x64xbf16> to vector<1x8x64xbf16>
    tpu.vector_store %arg6[%c2_44, %c0_45, %c0_46], %96 {strides = array<i32>} : memref<8x8x64xbf16, #tpu.memory_space<vmem>>, vector<1x8x64xbf16>,
    %c3_47 = arith.constant 3 : index
    %c0_48 = arith.constant 0 : index
    %c0_49 = arith.constant 0 : index
    %97 = vector.load %arg2[%c3_47, %c0_48, %c0_49] : memref<8x9x128xbf16, #tpu.memory_space<vmem>>, vector<1x9x128xbf16>
    %98 = vector.shape_cast %97 : vector<1x9x128xbf16> to vector<9x128xbf16>
    %c4 = arith.constant 4 : index
    %c0_50 = arith.constant 0 : index
    %c0_51 = arith.constant 0 : index
    %99 = vector.load %arg2[%c4, %c0_50, %c0_51] : memref<8x9x128xbf16, #tpu.memory_space<vmem>>, vector<1x9x128xbf16>
    %100 = vector.shape_cast %99 : vector<1x9x128xbf16> to vector<9x128xbf16>
    %cst_52 = arith.constant dense<0.000000e+00> : vector<9x64xf32>
    %101 = tpu.matmul %98, %1, %cst_52 {dimension_numbers = #tpu.dot_dimension_numbers<[1], [0], [0], [1], [0, 0, 1, 1], [], []>} : vector<9x128xbf16>, vector<128x64xbf16>, vector<9x64xf32> -> vector<9x64xf32>
    %102 = vector.extract_strided_slice %100 {offsets = [0, 0], sizes = [9, 64], strides = [1, 1]} : vector<9x128xbf16> to vector<9x64xbf16>
    %cst_53 = arith.constant dense<0.000000e+00> : vector<9x64xf32>
    %103 = tpu.matmul %102, %4, %cst_53 {dimension_numbers = #tpu.dot_dimension_numbers<[1], [0], [0], [1], [0, 0, 1, 1], [], []>} : vector<9x64xbf16>, vector<64x64xbf16>, vector<9x64xf32> -> vector<9x64xf32>
    %104 = arith.addf %101, %103 : vector<9x64xf32>
    %105 = vector.extract_strided_slice %98 {offsets = [0, 0], sizes = [9, 32], strides = [1, 1]} : vector<9x128xbf16> to vector<9x32xbf16>
    %cst_54 = arith.constant dense<0.000000e+00> : vector<9x64xf32>
    %106 = tpu.matmul %105, %2, %cst_54 {dimension_numbers = #tpu.dot_dimension_numbers<[1], [0], [0], [1], [0, 0, 1, 1], [], []>} : vector<9x32xbf16>, vector<32x64xbf16>, vector<9x64xf32> -> vector<9x64xf32>
    %107 = vector.extract_strided_slice %98 {offsets = [0, 64], sizes = [9, 32], strides = [1, 1]} : vector<9x128xbf16> to vector<9x32xbf16>
    %cst_55 = arith.constant dense<0.000000e+00> : vector<9x64xf32>
    %108 = tpu.matmul %107, %3, %cst_55 {dimension_numbers = #tpu.dot_dimension_numbers<[1], [0], [0], [1], [0, 0, 1, 1], [], []>} : vector<9x32xbf16>, vector<32x64xbf16>, vector<9x64xf32> -> vector<9x64xf32>
    %109 = arith.addf %106, %108 : vector<9x64xf32>
    %110 = vector.extract_strided_slice %100 {offsets = [0, 0], sizes = [9, 32], strides = [1, 1]} : vector<9x128xbf16> to vector<9x32xbf16>
    %cst_56 = arith.constant dense<0.000000e+00> : vector<9x64xf32>
    %111 = tpu.matmul %110, %5, %cst_56 {dimension_numbers = #tpu.dot_dimension_numbers<[1], [0], [0], [1], [0, 0, 1, 1], [], []>} : vector<9x32xbf16>, vector<32x64xbf16>, vector<9x64xf32> -> vector<9x64xf32>
    %112 = arith.addf %109, %111 : vector<9x64xf32>
    %113 = vector.extract_strided_slice %104 {offsets = [0, 0], sizes = [8, 64], strides = [1, 1]} : vector<9x64xf32> to vector<8x64xf32>
    %114 = vector.extract_strided_slice %112 {offsets = [1, 0], sizes = [8, 64], strides = [1, 1]} : vector<9x64xf32> to vector<8x64xf32>
    %115 = arith.addf %113, %114 : vector<8x64xf32>
    %116 = vector.broadcast %6 : vector<1x64xf32> to vector<8x64xf32>
    %117 = arith.addf %115, %116 : vector<8x64xf32>
    %cst_57 = arith.constant 0.000000e+00 : f32
    %118 = vector.broadcast %cst_57 : f32 to vector<8x64xf32>
    %119 = arith.cmpf oge, %117, %118 : vector<8x64xf32>
    %cst_58 = arith.constant 2.000000e-01 : f32
    %120 = vector.broadcast %cst_58 : f32 to vector<8x64xf32>
    %121 = arith.mulf %120, %117 : vector<8x64xf32>
    %122 = arith.select %119, %117, %121 : vector<8x64xi1>, vector<8x64xf32>
    %123 = arith.truncf %122 : vector<8x64xf32> to vector<8x64xbf16>
    %c3_59 = arith.constant 3 : index
    %c0_60 = arith.constant 0 : index
    %c0_61 = arith.constant 0 : index
    %124 = vector.load %arg6[%c3_59, %c0_60, %c0_61] : memref<8x8x64xbf16, #tpu.memory_space<vmem>>, vector<1x8x64xbf16>
    %125 = vector.shape_cast %124 : vector<1x8x64xbf16> to vector<8x64xbf16>
    %126 = vector.shape_cast %123 : vector<8x64xbf16> to vector<1x8x64xbf16>
    tpu.vector_store %arg6[%c3_59, %c0_60, %c0_61], %126 {strides = array<i32>} : memref<8x8x64xbf16, #tpu.memory_space<vmem>>, vector<1x8x64xbf16>,
    %c4_62 = arith.constant 4 : index
    %c0_63 = arith.constant 0 : index
    %c0_64 = arith.constant 0 : index
    %127 = vector.load %arg2[%c4_62, %c0_63, %c0_64] : memref<8x9x128xbf16, #tpu.memory_space<vmem>>, vector<1x9x128xbf16>
    %128 = vector.shape_cast %127 : vector<1x9x128xbf16> to vector<9x128xbf16>
    %c5 = arith.constant 5 : index
    %c0_65 = arith.constant 0 : index
    %c0_66 = arith.constant 0 : index
    %129 = vector.load %arg2[%c5, %c0_65, %c0_66] : memref<8x9x128xbf16, #tpu.memory_space<vmem>>, vector<1x9x128xbf16>
    %130 = vector.shape_cast %129 : vector<1x9x128xbf16> to vector<9x128xbf16>
    %cst_67 = arith.constant dense<0.000000e+00> : vector<9x64xf32>
    %131 = tpu.matmul %128, %1, %cst_67 {dimension_numbers = #tpu.dot_dimension_numbers<[1], [0], [0], [1], [0, 0, 1, 1], [], []>} : vector<9x128xbf16>, vector<128x64xbf16>, vector<9x64xf32> -> vector<9x64xf32>
    %132 = vector.extract_strided_slice %130 {offsets = [0, 0], sizes = [9, 64], strides = [1, 1]} : vector<9x128xbf16> to vector<9x64xbf16>
    %cst_68 = arith.constant dense<0.000000e+00> : vector<9x64xf32>
    %133 = tpu.matmul %132, %4, %cst_68 {dimension_numbers = #tpu.dot_dimension_numbers<[1], [0], [0], [1], [0, 0, 1, 1], [], []>} : vector<9x64xbf16>, vector<64x64xbf16>, vector<9x64xf32> -> vector<9x64xf32>
    %134 = arith.addf %131, %133 : vector<9x64xf32>
    %135 = vector.extract_strided_slice %128 {offsets = [0, 0], sizes = [9, 32], strides = [1, 1]} : vector<9x128xbf16> to vector<9x32xbf16>
    %cst_69 = arith.constant dense<0.000000e+00> : vector<9x64xf32>
    %136 = tpu.matmul %135, %2, %cst_69 {dimension_numbers = #tpu.dot_dimension_numbers<[1], [0], [0], [1], [0, 0, 1, 1], [], []>} : vector<9x32xbf16>, vector<32x64xbf16>, vector<9x64xf32> -> vector<9x64xf32>
    %137 = vector.extract_strided_slice %128 {offsets = [0, 64], sizes = [9, 32], strides = [1, 1]} : vector<9x128xbf16> to vector<9x32xbf16>
    %cst_70 = arith.constant dense<0.000000e+00> : vector<9x64xf32>
    %138 = tpu.matmul %137, %3, %cst_70 {dimension_numbers = #tpu.dot_dimension_numbers<[1], [0], [0], [1], [0, 0, 1, 1], [], []>} : vector<9x32xbf16>, vector<32x64xbf16>, vector<9x64xf32> -> vector<9x64xf32>
    %139 = arith.addf %136, %138 : vector<9x64xf32>
    %140 = vector.extract_strided_slice %130 {offsets = [0, 0], sizes = [9, 32], strides = [1, 1]} : vector<9x128xbf16> to vector<9x32xbf16>
    %cst_71 = arith.constant dense<0.000000e+00> : vector<9x64xf32>
    %141 = tpu.matmul %140, %5, %cst_71 {dimension_numbers = #tpu.dot_dimension_numbers<[1], [0], [0], [1], [0, 0, 1, 1], [], []>} : vector<9x32xbf16>, vector<32x64xbf16>, vector<9x64xf32> -> vector<9x64xf32>
    %142 = arith.addf %139, %141 : vector<9x64xf32>
    %143 = vector.extract_strided_slice %134 {offsets = [0, 0], sizes = [8, 64], strides = [1, 1]} : vector<9x64xf32> to vector<8x64xf32>
    %144 = vector.extract_strided_slice %142 {offsets = [1, 0], sizes = [8, 64], strides = [1, 1]} : vector<9x64xf32> to vector<8x64xf32>
    %145 = arith.addf %143, %144 : vector<8x64xf32>
    %146 = vector.broadcast %6 : vector<1x64xf32> to vector<8x64xf32>
    %147 = arith.addf %145, %146 : vector<8x64xf32>
    %cst_72 = arith.constant 0.000000e+00 : f32
    %148 = vector.broadcast %cst_72 : f32 to vector<8x64xf32>
    %149 = arith.cmpf oge, %147, %148 : vector<8x64xf32>
    %cst_73 = arith.constant 2.000000e-01 : f32
    %150 = vector.broadcast %cst_73 : f32 to vector<8x64xf32>
    %151 = arith.mulf %150, %147 : vector<8x64xf32>
    %152 = arith.select %149, %147, %151 : vector<8x64xi1>, vector<8x64xf32>
    %153 = arith.truncf %152 : vector<8x64xf32> to vector<8x64xbf16>
    %c4_74 = arith.constant 4 : index
    %c0_75 = arith.constant 0 : index
    %c0_76 = arith.constant 0 : index
    %154 = vector.load %arg6[%c4_74, %c0_75, %c0_76] : memref<8x8x64xbf16, #tpu.memory_space<vmem>>, vector<1x8x64xbf16>
    %155 = vector.shape_cast %154 : vector<1x8x64xbf16> to vector<8x64xbf16>
    %156 = vector.shape_cast %153 : vector<8x64xbf16> to vector<1x8x64xbf16>
    tpu.vector_store %arg6[%c4_74, %c0_75, %c0_76], %156 {strides = array<i32>} : memref<8x8x64xbf16, #tpu.memory_space<vmem>>, vector<1x8x64xbf16>,
    %c5_77 = arith.constant 5 : index
    %c0_78 = arith.constant 0 : index
    %c0_79 = arith.constant 0 : index
    %157 = vector.load %arg2[%c5_77, %c0_78, %c0_79] : memref<8x9x128xbf16, #tpu.memory_space<vmem>>, vector<1x9x128xbf16>
    %158 = vector.shape_cast %157 : vector<1x9x128xbf16> to vector<9x128xbf16>
    %c6 = arith.constant 6 : index
    %c0_80 = arith.constant 0 : index
    %c0_81 = arith.constant 0 : index
    %159 = vector.load %arg2[%c6, %c0_80, %c0_81] : memref<8x9x128xbf16, #tpu.memory_space<vmem>>, vector<1x9x128xbf16>
    %160 = vector.shape_cast %159 : vector<1x9x128xbf16> to vector<9x128xbf16>
    %cst_82 = arith.constant dense<0.000000e+00> : vector<9x64xf32>
    %161 = tpu.matmul %158, %1, %cst_82 {dimension_numbers = #tpu.dot_dimension_numbers<[1], [0], [0], [1], [0, 0, 1, 1], [], []>} : vector<9x128xbf16>, vector<128x64xbf16>, vector<9x64xf32> -> vector<9x64xf32>
    %162 = vector.extract_strided_slice %160 {offsets = [0, 0], sizes = [9, 64], strides = [1, 1]} : vector<9x128xbf16> to vector<9x64xbf16>
    %cst_83 = arith.constant dense<0.000000e+00> : vector<9x64xf32>
    %163 = tpu.matmul %162, %4, %cst_83 {dimension_numbers = #tpu.dot_dimension_numbers<[1], [0], [0], [1], [0, 0, 1, 1], [], []>} : vector<9x64xbf16>, vector<64x64xbf16>, vector<9x64xf32> -> vector<9x64xf32>
    %164 = arith.addf %161, %163 : vector<9x64xf32>
    %165 = vector.extract_strided_slice %158 {offsets = [0, 0], sizes = [9, 32], strides = [1, 1]} : vector<9x128xbf16> to vector<9x32xbf16>
    %cst_84 = arith.constant dense<0.000000e+00> : vector<9x64xf32>
    %166 = tpu.matmul %165, %2, %cst_84 {dimension_numbers = #tpu.dot_dimension_numbers<[1], [0], [0], [1], [0, 0, 1, 1], [], []>} : vector<9x32xbf16>, vector<32x64xbf16>, vector<9x64xf32> -> vector<9x64xf32>
    %167 = vector.extract_strided_slice %158 {offsets = [0, 64], sizes = [9, 32], strides = [1, 1]} : vector<9x128xbf16> to vector<9x32xbf16>
    %cst_85 = arith.constant dense<0.000000e+00> : vector<9x64xf32>
    %168 = tpu.matmul %167, %3, %cst_85 {dimension_numbers = #tpu.dot_dimension_numbers<[1], [0], [0], [1], [0, 0, 1, 1], [], []>} : vector<9x32xbf16>, vector<32x64xbf16>, vector<9x64xf32> -> vector<9x64xf32>
    %169 = arith.addf %166, %168 : vector<9x64xf32>
    %170 = vector.extract_strided_slice %160 {offsets = [0, 0], sizes = [9, 32], strides = [1, 1]} : vector<9x128xbf16> to vector<9x32xbf16>
    %cst_86 = arith.constant dense<0.000000e+00> : vector<9x64xf32>
    %171 = tpu.matmul %170, %5, %cst_86 {dimension_numbers = #tpu.dot_dimension_numbers<[1], [0], [0], [1], [0, 0, 1, 1], [], []>} : vector<9x32xbf16>, vector<32x64xbf16>, vector<9x64xf32> -> vector<9x64xf32>
    %172 = arith.addf %169, %171 : vector<9x64xf32>
    %173 = vector.extract_strided_slice %164 {offsets = [0, 0], sizes = [8, 64], strides = [1, 1]} : vector<9x64xf32> to vector<8x64xf32>
    %174 = vector.extract_strided_slice %172 {offsets = [1, 0], sizes = [8, 64], strides = [1, 1]} : vector<9x64xf32> to vector<8x64xf32>
    %175 = arith.addf %173, %174 : vector<8x64xf32>
    %176 = vector.broadcast %6 : vector<1x64xf32> to vector<8x64xf32>
    %177 = arith.addf %175, %176 : vector<8x64xf32>
    %cst_87 = arith.constant 0.000000e+00 : f32
    %178 = vector.broadcast %cst_87 : f32 to vector<8x64xf32>
    %179 = arith.cmpf oge, %177, %178 : vector<8x64xf32>
    %cst_88 = arith.constant 2.000000e-01 : f32
    %180 = vector.broadcast %cst_88 : f32 to vector<8x64xf32>
    %181 = arith.mulf %180, %177 : vector<8x64xf32>
    %182 = arith.select %179, %177, %181 : vector<8x64xi1>, vector<8x64xf32>
    %183 = arith.truncf %182 : vector<8x64xf32> to vector<8x64xbf16>
    %c5_89 = arith.constant 5 : index
    %c0_90 = arith.constant 0 : index
    %c0_91 = arith.constant 0 : index
    %184 = vector.load %arg6[%c5_89, %c0_90, %c0_91] : memref<8x8x64xbf16, #tpu.memory_space<vmem>>, vector<1x8x64xbf16>
    %185 = vector.shape_cast %184 : vector<1x8x64xbf16> to vector<8x64xbf16>
    %186 = vector.shape_cast %183 : vector<8x64xbf16> to vector<1x8x64xbf16>
    tpu.vector_store %arg6[%c5_89, %c0_90, %c0_91], %186 {strides = array<i32>} : memref<8x8x64xbf16, #tpu.memory_space<vmem>>, vector<1x8x64xbf16>,
    %c6_92 = arith.constant 6 : index
    %c0_93 = arith.constant 0 : index
    %c0_94 = arith.constant 0 : index
    %187 = vector.load %arg2[%c6_92, %c0_93, %c0_94] : memref<8x9x128xbf16, #tpu.memory_space<vmem>>, vector<1x9x128xbf16>
    %188 = vector.shape_cast %187 : vector<1x9x128xbf16> to vector<9x128xbf16>
    %c7 = arith.constant 7 : index
    %c0_95 = arith.constant 0 : index
    %c0_96 = arith.constant 0 : index
    %189 = vector.load %arg2[%c7, %c0_95, %c0_96] : memref<8x9x128xbf16, #tpu.memory_space<vmem>>, vector<1x9x128xbf16>
    %190 = vector.shape_cast %189 : vector<1x9x128xbf16> to vector<9x128xbf16>
    %cst_97 = arith.constant dense<0.000000e+00> : vector<9x64xf32>
    %191 = tpu.matmul %188, %1, %cst_97 {dimension_numbers = #tpu.dot_dimension_numbers<[1], [0], [0], [1], [0, 0, 1, 1], [], []>} : vector<9x128xbf16>, vector<128x64xbf16>, vector<9x64xf32> -> vector<9x64xf32>
    %192 = vector.extract_strided_slice %190 {offsets = [0, 0], sizes = [9, 64], strides = [1, 1]} : vector<9x128xbf16> to vector<9x64xbf16>
    %cst_98 = arith.constant dense<0.000000e+00> : vector<9x64xf32>
    %193 = tpu.matmul %192, %4, %cst_98 {dimension_numbers = #tpu.dot_dimension_numbers<[1], [0], [0], [1], [0, 0, 1, 1], [], []>} : vector<9x64xbf16>, vector<64x64xbf16>, vector<9x64xf32> -> vector<9x64xf32>
    %194 = arith.addf %191, %193 : vector<9x64xf32>
    %195 = vector.extract_strided_slice %188 {offsets = [0, 0], sizes = [9, 32], strides = [1, 1]} : vector<9x128xbf16> to vector<9x32xbf16>
    %cst_99 = arith.constant dense<0.000000e+00> : vector<9x64xf32>
    %196 = tpu.matmul %195, %2, %cst_99 {dimension_numbers = #tpu.dot_dimension_numbers<[1], [0], [0], [1], [0, 0, 1, 1], [], []>} : vector<9x32xbf16>, vector<32x64xbf16>, vector<9x64xf32> -> vector<9x64xf32>
    %197 = vector.extract_strided_slice %188 {offsets = [0, 64], sizes = [9, 32], strides = [1, 1]} : vector<9x128xbf16> to vector<9x32xbf16>
    %cst_100 = arith.constant dense<0.000000e+00> : vector<9x64xf32>
    %198 = tpu.matmul %197, %3, %cst_100 {dimension_numbers = #tpu.dot_dimension_numbers<[1], [0], [0], [1], [0, 0, 1, 1], [], []>} : vector<9x32xbf16>, vector<32x64xbf16>, vector<9x64xf32> -> vector<9x64xf32>
    %199 = arith.addf %196, %198 : vector<9x64xf32>
    %200 = vector.extract_strided_slice %190 {offsets = [0, 0], sizes = [9, 32], strides = [1, 1]} : vector<9x128xbf16> to vector<9x32xbf16>
    %cst_101 = arith.constant dense<0.000000e+00> : vector<9x64xf32>
    %201 = tpu.matmul %200, %5, %cst_101 {dimension_numbers = #tpu.dot_dimension_numbers<[1], [0], [0], [1], [0, 0, 1, 1], [], []>} : vector<9x32xbf16>, vector<32x64xbf16>, vector<9x64xf32> -> vector<9x64xf32>
    %202 = arith.addf %199, %201 : vector<9x64xf32>
    %203 = vector.extract_strided_slice %194 {offsets = [0, 0], sizes = [8, 64], strides = [1, 1]} : vector<9x64xf32> to vector<8x64xf32>
    %204 = vector.extract_strided_slice %202 {offsets = [1, 0], sizes = [8, 64], strides = [1, 1]} : vector<9x64xf32> to vector<8x64xf32>
    %205 = arith.addf %203, %204 : vector<8x64xf32>
    %206 = vector.broadcast %6 : vector<1x64xf32> to vector<8x64xf32>
    %207 = arith.addf %205, %206 : vector<8x64xf32>
    %cst_102 = arith.constant 0.000000e+00 : f32
    %208 = vector.broadcast %cst_102 : f32 to vector<8x64xf32>
    %209 = arith.cmpf oge, %207, %208 : vector<8x64xf32>
    %cst_103 = arith.constant 2.000000e-01 : f32
    %210 = vector.broadcast %cst_103 : f32 to vector<8x64xf32>
    %211 = arith.mulf %210, %207 : vector<8x64xf32>
    %212 = arith.select %209, %207, %211 : vector<8x64xi1>, vector<8x64xf32>
    %213 = arith.truncf %212 : vector<8x64xf32> to vector<8x64xbf16>
    %c6_104 = arith.constant 6 : index
    %c0_105 = arith.constant 0 : index
    %c0_106 = arith.constant 0 : index
    %214 = vector.load %arg6[%c6_104, %c0_105, %c0_106] : memref<8x8x64xbf16, #tpu.memory_space<vmem>>, vector<1x8x64xbf16>
    %215 = vector.shape_cast %214 : vector<1x8x64xbf16> to vector<8x64xbf16>
    %216 = vector.shape_cast %213 : vector<8x64xbf16> to vector<1x8x64xbf16>
    tpu.vector_store %arg6[%c6_104, %c0_105, %c0_106], %216 {strides = array<i32>} : memref<8x8x64xbf16, #tpu.memory_space<vmem>>, vector<1x8x64xbf16>,
    %c7_107 = arith.constant 7 : index
    %c0_108 = arith.constant 0 : index
    %c0_109 = arith.constant 0 : index
    %217 = vector.load %arg2[%c7_107, %c0_108, %c0_109] : memref<8x9x128xbf16, #tpu.memory_space<vmem>>, vector<1x9x128xbf16>
    %218 = vector.shape_cast %217 : vector<1x9x128xbf16> to vector<9x128xbf16>
    %c0_110 = arith.constant 0 : index
    %c0_111 = arith.constant 0 : index
    %c0_112 = arith.constant 0 : index
    %219 = vector.load %arg3[%c0_110, %c0_111, %c0_112] : memref<1x9x128xbf16, #tpu.memory_space<vmem>>, vector<1x9x128xbf16>
    %220 = vector.shape_cast %219 : vector<1x9x128xbf16> to vector<9x128xbf16>
    %cst_113 = arith.constant dense<0.000000e+00> : vector<9x64xf32>
    %221 = tpu.matmul %218, %1, %cst_113 {dimension_numbers = #tpu.dot_dimension_numbers<[1], [0], [0], [1], [0, 0, 1, 1], [], []>} : vector<9x128xbf16>, vector<128x64xbf16>, vector<9x64xf32> -> vector<9x64xf32>
    %222 = vector.extract_strided_slice %220 {offsets = [0, 0], sizes = [9, 64], strides = [1, 1]} : vector<9x128xbf16> to vector<9x64xbf16>
    %cst_114 = arith.constant dense<0.000000e+00> : vector<9x64xf32>
    %223 = tpu.matmul %222, %4, %cst_114 {dimension_numbers = #tpu.dot_dimension_numbers<[1], [0], [0], [1], [0, 0, 1, 1], [], []>} : vector<9x64xbf16>, vector<64x64xbf16>, vector<9x64xf32> -> vector<9x64xf32>
    %224 = arith.addf %221, %223 : vector<9x64xf32>
    %225 = vector.extract_strided_slice %218 {offsets = [0, 0], sizes = [9, 32], strides = [1, 1]} : vector<9x128xbf16> to vector<9x32xbf16>
    %cst_115 = arith.constant dense<0.000000e+00> : vector<9x64xf32>
    %226 = tpu.matmul %225, %2, %cst_115 {dimension_numbers = #tpu.dot_dimension_numbers<[1], [0], [0], [1], [0, 0, 1, 1], [], []>} : vector<9x32xbf16>, vector<32x64xbf16>, vector<9x64xf32> -> vector<9x64xf32>
    %227 = vector.extract_strided_slice %218 {offsets = [0, 64], sizes = [9, 32], strides = [1, 1]} : vector<9x128xbf16> to vector<9x32xbf16>
    %cst_116 = arith.constant dense<0.000000e+00> : vector<9x64xf32>
    %228 = tpu.matmul %227, %3, %cst_116 {dimension_numbers = #tpu.dot_dimension_numbers<[1], [0], [0], [1], [0, 0, 1, 1], [], []>} : vector<9x32xbf16>, vector<32x64xbf16>, vector<9x64xf32> -> vector<9x64xf32>
    %229 = arith.addf %226, %228 : vector<9x64xf32>
    %230 = vector.extract_strided_slice %220 {offsets = [0, 0], sizes = [9, 32], strides = [1, 1]} : vector<9x128xbf16> to vector<9x32xbf16>
    %cst_117 = arith.constant dense<0.000000e+00> : vector<9x64xf32>
    %231 = tpu.matmul %230, %5, %cst_117 {dimension_numbers = #tpu.dot_dimension_numbers<[1], [0], [0], [1], [0, 0, 1, 1], [], []>} : vector<9x32xbf16>, vector<32x64xbf16>, vector<9x64xf32> -> vector<9x64xf32>
    %232 = arith.addf %229, %231 : vector<9x64xf32>
    %233 = vector.extract_strided_slice %224 {offsets = [0, 0], sizes = [8, 64], strides = [1, 1]} : vector<9x64xf32> to vector<8x64xf32>
    %234 = vector.extract_strided_slice %232 {offsets = [1, 0], sizes = [8, 64], strides = [1, 1]} : vector<9x64xf32> to vector<8x64xf32>
    %235 = arith.addf %233, %234 : vector<8x64xf32>
    %236 = vector.broadcast %6 : vector<1x64xf32> to vector<8x64xf32>
    %237 = arith.addf %235, %236 : vector<8x64xf32>
    %cst_118 = arith.constant 0.000000e+00 : f32
    %238 = vector.broadcast %cst_118 : f32 to vector<8x64xf32>
    %239 = arith.cmpf oge, %237, %238 : vector<8x64xf32>
    %cst_119 = arith.constant 2.000000e-01 : f32
    %240 = vector.broadcast %cst_119 : f32 to vector<8x64xf32>
    %241 = arith.mulf %240, %237 : vector<8x64xf32>
    %242 = arith.select %239, %237, %241 : vector<8x64xi1>, vector<8x64xf32>
    %243 = arith.truncf %242 : vector<8x64xf32> to vector<8x64xbf16>
    %c7_120 = arith.constant 7 : index
    %c0_121 = arith.constant 0 : index
    %c0_122 = arith.constant 0 : index
    %244 = vector.load %arg6[%c7_120, %c0_121, %c0_122] : memref<8x8x64xbf16, #tpu.memory_space<vmem>>, vector<1x8x64xbf16>
    %245 = vector.shape_cast %244 : vector<1x8x64xbf16> to vector<8x64xbf16>
    %246 = vector.shape_cast %243 : vector<8x64xbf16> to vector<1x8x64xbf16>
    tpu.vector_store %arg6[%c7_120, %c0_121, %c0_122], %246 {strides = array<i32>} : memref<8x8x64xbf16, #tpu.memory_space<vmem>>, vector<1x8x64xbf16>,
    return
  }
  func.func @transform_0(%arg0: i32, %arg1: i32) -> (i32, i32, i32) {
    %c0_i32 = arith.constant 0 : i32
    %c0_i32_0 = arith.constant 0 : i32
    %c0_i32_1 = arith.constant 0 : i32
    return %arg0, %c0_i32, %c0_i32_0 : i32, i32, i32
  }
  func.func @transform_1(%arg0: i32, %arg1: i32) -> (i32, i32, i32) {
    %c1_i32 = arith.constant 1 : i32
    %0 = arith.addi %arg0, %c1_i32 : i32
    %c8_i32 = arith.constant 8 : i32
    %1 = arith.muli %0, %c8_i32 : i32
    %c0_i32 = arith.constant 0 : i32
    %c0_i32_0 = arith.constant 0 : i32
    %c0_i32_1 = arith.constant 0 : i32
    return %1, %c0_i32, %c0_i32_0 : i32, i32, i32
  }
  func.func @transform_2(%arg0: i32, %arg1: i32) -> (i32, i32) {
    %c0_i32 = arith.constant 0 : i32
    %c0_i32_0 = arith.constant 0 : i32
    return %c0_i32, %arg1 : i32, i32
  }
  func.func @transform_3(%arg0: i32, %arg1: i32) -> (i32, i32) {
    %c0_i32 = arith.constant 0 : i32
    %c0_i32_0 = arith.constant 0 : i32
    return %c0_i32, %arg1 : i32, i32
  }
  func.func @transform_4(%arg0: i32, %arg1: i32) -> (i32, i32, i32) {
    %c0_i32 = arith.constant 0 : i32
    %c0_i32_0 = arith.constant 0 : i32
    return %arg0, %c0_i32, %arg1 : i32, i32, i32
  }
}

</mosaic_0001>

<llo_original>
// kernel: tpu_custom_call.1
$region0: #{tpu_custom_call.1}
  #allocation0 [shape = 'u32[]', space=smem, size = 0x4, offset = 0x4, fixed_abs, tag = 'smem constant byte address 0x4 - core index']
  #allocation1 [shape = 'u32[72,128]{1,0:T(1,128)}', space=vmem, size = 0x9000, scoped, tag = 'internal scratch']
  %s0 = inlined_call_operand.vmem [shape: bf16[9,9,128], index: 0, kind: input, shape index: {}]
  %s1 = inlined_call_operand.vmem [shape: bf16[9,9,128], index: 1, kind: input, shape index: {}]
  %s2 = inlined_call_operand.vmem [shape: bf16[288,64], index: 2, kind: input, shape index: {}]
  %s3 = inlined_call_operand.vmem [shape: f32[1,64], index: 3, kind: input, shape index: {}]
  %s4 = inlined_call_operand.hbm [shape: bf16[8,8,64], index: 4, kind: output, shape index: {}]
  %s5 = sld [smem:[#allocation0]]
  $region26: #{tpu_custom_call.1} parent=0
    _
  %s7 = ssub.s32 1, %s5
  %s8 = scalar_select 0, %s7, %s5
  $region1: #{tpu_custom_call.1} parent=0
    #allocation2 [shape = 'u8[16384]{0}', space=vmem, size = 0x4000, scoped, tag = 'output window, operand 0, single buffered']
    #allocation3 [shape = 's32[1]{0}', space=sflag, size = 0x4, scoped, tag = 'scoped memory for tpu_custom_call.1']
    %9 = vsyncpa [#allocation3], 0
    // Predicated region
    $region2: #{tpu_custom_call.1} parent=1 // pred_check
      _
    $region3: #{tpu_custom_call.1} parent=1 // pred_check_branch
      %11 = sbr.rel (0) target = $region5
    $region4: #{tpu_custom_call.1} parent=1 // pred_region
      _
    $region5: #{tpu_custom_call.1} parent=1 // pred_fallthru
      _
    // Predicated region
    $region6: #{tpu_custom_call.1} parent=1 // pred_check
      _
    $region7: #{tpu_custom_call.1} parent=1 // pred_check_branch
      %13 = sbr.rel (0) target = $region9
    $region8: #{tpu_custom_call.1} parent=1 // pred_region
      %s14 = sadd.s32 0, 1
      %s15 = smul.u32 %s14, 8
      %p16 = scmp.lt.s32.totalorder %s15, 8
      %s17 = scalar_select %p16, %s15, 8
      %s18 = smul.addr %s17, 2
      %s19 = smul.addr %s18, 4
      %s20 = scalar_lea.vmem %s1, %s19
      %s21 = sadd.s32 0, 1
      %s22 = smul.u32 %s21, 8
    $region9: #{tpu_custom_call.1} parent=1 // pred_fallthru
      _
    // Predicated region
    $region10: #{tpu_custom_call.1} parent=1 // pred_check
      _
    $region11: #{tpu_custom_call.1} parent=1 // pred_check_branch
      %24 = sbr.rel (0) target = $region13
    $region12: #{tpu_custom_call.1} parent=1 // pred_region
      _
    $region13: #{tpu_custom_call.1} parent=1 // pred_fallthru
      _
    // Predicated region
    $region14: #{tpu_custom_call.1} parent=1 // pred_check
      _
    $region15: #{tpu_custom_call.1} parent=1 // pred_check_branch
      %26 = sbr.rel (0) target = $region17
    $region16: #{tpu_custom_call.1} parent=1 // pred_region
      _
    $region17: #{tpu_custom_call.1} parent=1 // pred_fallthru
      _
    %s27 = sadd.s32 0, 1
    %s28 = smul.u32 %s27, 8
    %p29 = scmp.lt.s32.totalorder %s28, 8
    %s30 = scalar_select %p29, %s28, 8
    %s31 = smul.addr %s30, 2
    %s32 = smul.addr %s31, 4
    %s33 = scalar_lea.vmem %s1, %s32
    %s34 = sadd.s32 0, 1
    %s35 = smul.u32 %s34, 8
    %p36 = scmp.lt.s32.totalorder %s35, 8
    %s37 = scalar_select %p36, %s35, 8
    %s38 = smul.addr %s37, 2
    %s39 = smul.addr %s38, 4
    %s40 = scalar_lea.vmem %s1, %s39
    %s41 = sadd.s32 0, 1
    %s42 = smul.u32 %s41, 8
    %v44 = vld [vmem:[%s2] sm:$0xf]
    %v45 = vld [vmem:[%s2 + $0x4] sm:$0xf]
    %v46 = vld [vmem:[%s2 + $0x8] sm:$0xf]
    %v47 = vld [vmem:[%s2 + $0xc] sm:$0xf]
    %v48 = vld [vmem:[%s2 + $0x10] sm:$0xf]
    %v49 = vld [vmem:[%s2 + $0x14] sm:$0xf]
    %v50 = vld [vmem:[%s2 + $0x18] sm:$0xf]
    %v51 = vld [vmem:[%s2 + $0x1c] sm:$0xf]
    %v52 = vld [vmem:[%s2 + $0x20] sm:$0xf]
    %v53 = vld [vmem:[%s2 + $0x24] sm:$0xf]
    %v54 = vld [vmem:[%s2 + $0x28] sm:$0xf]
    %v55 = vld [vmem:[%s2 + $0x2c] sm:$0xf]
    %v56 = vld [vmem:[%s2 + $0x30] sm:$0xf]
    %v57 = vld [vmem:[%s2 + $0x34] sm:$0xf]
    %v58 = vld [vmem:[%s2 + $0x38] sm:$0xf]
    %v59 = vld [vmem:[%s2 + $0x3c] sm:$0xf]
    %v60 = vld [vmem:[%s2 + $0x40] sm:$0xf]
    %v61 = vld [vmem:[%s2 + $0x44] sm:$0xf]
    %v62 = vld [vmem:[%s2 + $0x48] sm:$0xf]
    %v63 = vld [vmem:[%s2 + $0x4c] sm:$0xf]
    %v64 = vld [vmem:[%s2 + $0x50] sm:$0xf]
    %v65 = vld [vmem:[%s2 + $0x54] sm:$0xf]
    %v66 = vld [vmem:[%s2 + $0x58] sm:$0xf]
    %v67 = vld [vmem:[%s2 + $0x5c] sm:$0xf]
    %v68 = vld [vmem:[%s2 + $0x60] sm:$0xf]
    %v69 = vld [vmem:[%s2 + $0x64] sm:$0xf]
    %v70 = vld [vmem:[%s2 + $0x68] sm:$0xf]
    %v71 = vld [vmem:[%s2 + $0x6c] sm:$0xf]
    %v72 = vld [vmem:[%s2 + $0x70] sm:$0xf]
    %v73 = vld [vmem:[%s2 + $0x74] sm:$0xf]
    %v74 = vld [vmem:[%s2 + $0x78] sm:$0xf]
    %v75 = vld [vmem:[%s2 + $0x7c] sm:$0xf]
    %v76 = vld [vmem:[%s2 + $0x80] sm:$0xf]
    %v77 = vld [vmem:[%s2 + $0x84] sm:$0xf]
    %v78 = vld [vmem:[%s2 + $0x88] sm:$0xf]
    %v79 = vld [vmem:[%s2 + $0x8c] sm:$0xf]
    %v80 = vld [vmem:[%s3] sm:$0x1]
    %v81 = vld [vmem:[%s0] sm:$0xf]
    %v82 = vld [vmem:[%s0 + $0x4] sm:$0x1]
    %s83 = scalar_lea.vmem %s0, 8
    %v84 = vld [vmem:[%s83] sm:$0xf]
    %v85 = vld [vmem:[%s83 + $0x4] sm:$0x1]
    %v88 = vunpack.c.l.b16 %v84
    %v89 = vunpack.c.l.b16 %v85
    %v90 = vpack.c.b16 %v89, %v88
    %v99 = vunpack.c.l.b16 %v68
    %v100 = vunpack.c.l.b16 %v69
    %v101 = vunpack.c.l.b16 %v70
    %v102 = vunpack.c.l.b16 %v71
    %v103 = vunpack.c.l.b16 %v72
    %v104 = vunpack.c.l.b16 %v73
    %v105 = vunpack.c.l.b16 %v74
    %v106 = vunpack.c.l.b16 %v75
    %v107 = vpack.c.b16 %v100, %v99
    %v108 = vpack.c.b16 %v102, %v101
    %v109 = vpack.c.b16 %v104, %v103
    %v110 = vpack.c.b16 %v106, %v105
    %vm115 = vcmask 523264
    %v117 = vsel %vm115, %v90, 0
    %119 = vmatpush.bf16.msra.mxu0 0
    %120 = vmatpush.bf16.msra.mxu0 0
    %121 = vmatpush.bf16.msra.mxu0 0
    %122 = vmatpush.bf16.msra.mxu0 0
    %123 = vmatpush.bf16.msra.mxu0 %v110
    %124 = vmatpush.bf16.msra.mxu0 %v109
    %125 = vmatpush.bf16.msra.mxu0 %v108
    %126 = vmatpush.bf16.msra.mxu0 %v107
    %127 = vmatmul.bf16.gmra.mxu0 %v117
    %v128 = vpop.f32.mrf.mxu0
    %v129 = vadd.f32 0.0, %v128
    %v130 = vpop.f32.mrf.mxu0
    %131 = vdwg.mxu0
    %v134 = vunpack.c.l.b16 %v81
    %v135 = vunpack.c.l.b16 %v82
    %v136 = vpack.c.b16 %v135, %v134
    %v154 = vunpack.c.l.b16 %v44
    %v155 = vunpack.c.l.b16 %v45
    %v156 = vunpack.c.l.b16 %v46
    %v157 = vunpack.c.l.b16 %v47
    %v158 = vunpack.c.l.b16 %v48
    %v159 = vunpack.c.l.b16 %v49
    %v160 = vunpack.c.l.b16 %v50
    %v161 = vunpack.c.l.b16 %v51
    %v162 = vunpack.c.l.b16 %v52
    %v163 = vunpack.c.l.b16 %v53
    %v164 = vunpack.c.l.b16 %v54
    %v165 = vunpack.c.l.b16 %v55
    %v166 = vunpack.c.l.b16 %v56
    %v167 = vunpack.c.l.b16 %v57
    %v168 = vunpack.c.l.b16 %v58
    %v169 = vunpack.c.l.b16 %v59
    %v170 = vpack.c.b16 %v155, %v154
    %v171 = vpack.c.b16 %v157, %v156
    %v172 = vpack.c.b16 %v159, %v158
    %v173 = vpack.c.b16 %v161, %v160
    %v174 = vpack.c.b16 %v163, %v162
    %v175 = vpack.c.b16 %v165, %v164
    %v176 = vpack.c.b16 %v167, %v166
    %v177 = vpack.c.b16 %v169, %v168
    %186 = vmatpush.bf16.msra.mxu0 %v177
    %187 = vmatpush.bf16.msra.mxu0 %v176
    %188 = vmatpush.bf16.msra.mxu0 %v175
    %189 = vmatpush.bf16.msra.mxu0 %v174
    %190 = vmatpush.bf16.msra.mxu0 %v173
    %191 = vmatpush.bf16.msra.mxu0 %v172
    %192 = vmatpush.bf16.msra.mxu0 %v171
    %193 = vmatpush.bf16.msra.mxu0 %v170
    %194 = vmatmul.bf16.gmra.mxu0 %v136
    %v195 = vpop.f32.mrf.mxu0
    %v196 = vadd.f32 %v129, %v195
    %v197 = vpop.f32.mrf.mxu0
    %198 = vdwg.mxu0
    %199 = vrot.lane.b32.xlu0 %v136, 64
    %v200 = vpop.permute.xlu0 %199
    %v205 = vunpack.c.l.b16 %v64
    %v206 = vunpack.c.l.b16 %v65
    %v207 = vunpack.c.l.b16 %v66
    %v208 = vunpack.c.l.b16 %v67
    %v209 = vpack.c.b16 %v206, %v205
    %v210 = vpack.c.b16 %v208, %v207
    %vm213 = vcmask 261120
    %v215 = vsel %vm213, %v200, 0
    %217 = vmatpush.bf16.msra.mxu0 0
    %218 = vmatpush.bf16.msra.mxu0 0
    %219 = vmatpush.bf16.msra.mxu0 0
    %220 = vmatpush.bf16.msra.mxu0 0
    %221 = vmatpush.bf16.msra.mxu0 0
    %222 = vmatpush.bf16.msra.mxu0 0
    %223 = vmatpush.bf16.msra.mxu0 %v210
    %224 = vmatpush.bf16.msra.mxu0 %v209
    %225 = vmatmul.bf16.gmra.mxu0 %v215
    %v226 = vpop.f32.mrf.mxu0
    %v227 = vadd.f32 0.0, %v226
    %v228 = vpop.f32.mrf.mxu0
    %v229 = vadd.f32 0.0, %v228
    %230 = vdwg.mxu0
    %v235 = vunpack.c.l.b16 %v60
    %v236 = vunpack.c.l.b16 %v61
    %v237 = vunpack.c.l.b16 %v62
    %v238 = vunpack.c.l.b16 %v63
    %v239 = vpack.c.b16 %v236, %v235
    %v240 = vpack.c.b16 %v238, %v237
    %v244 = vsel %vm213, %v136, 0
    %246 = vmatpush.bf16.msra.mxu0 0
    %247 = vmatpush.bf16.msra.mxu0 0
    %248 = vmatpush.bf16.msra.mxu0 0
    %249 = vmatpush.bf16.msra.mxu0 0
    %250 = vmatpush.bf16.msra.mxu0 0
    %251 = vmatpush.bf16.msra.mxu0 0
    %252 = vmatpush.bf16.msra.mxu0 %v240
    %253 = vmatpush.bf16.msra.mxu0 %v239
    %254 = vmatmul.bf16.gmra.mxu0 %v244
    %v255 = vpop.f32.mrf.mxu0
    %v256 = vadd.f32 %v227, %v255
    %v257 = vpop.f32.mrf.mxu0
    %v258 = vadd.f32 %v229, %v257
    %259 = vdwg.mxu0
    %v264 = vunpack.c.l.b16 %v76
    %v265 = vunpack.c.l.b16 %v77
    %v266 = vunpack.c.l.b16 %v78
    %v267 = vunpack.c.l.b16 %v79
    %v268 = vpack.c.b16 %v265, %v264
    %v269 = vpack.c.b16 %v267, %v266
    %v272 = vsel %vm213, %v90, 0
    %274 = vmatpush.bf16.msra.mxu0 0
    %275 = vmatpush.bf16.msra.mxu0 0
    %276 = vmatpush.bf16.msra.mxu0 0
    %277 = vmatpush.bf16.msra.mxu0 0
    %278 = vmatpush.bf16.msra.mxu0 0
    %279 = vmatpush.bf16.msra.mxu0 0
    %280 = vmatpush.bf16.msra.mxu0 %v269
    %281 = vmatpush.bf16.msra.mxu0 %v268
    %282 = vmatmul.bf16.gmra.mxu0 %v272
    %v283 = vpop.f32.mrf.mxu0
    %v284 = vadd.f32 0.0, %v283
    %v285 = vpop.f32.mrf.mxu0
    %v286 = vadd.f32 0.0, %v285
    %287 = vdwg.mxu0
    %v288 = vadd.f32 %v256, %v284
    %v289 = vadd.f32 %v258, %v286
    %vm292 = vcmask 1046528
    %v293 = vrot.slane %v288, 1
    %v294 = vrot.slane %v289, 1
    %v295 = vsel %vm292, %v293, %v294
    %v297 = vadd.f32 %v196, %v295
    %v299 = vperm.slane %v80, 0
    %v301 = vadd.f32 %v297, %v299
    %vm302 = vcmp.ge.f32.partialorder %v301, 0.0
    %v303 = vmul.f32 %v301, 0.2
    %v304 = vsel %vm302, %v301, %v303
    %v305 = vpack.c.bf16 %v304, %v304
    %vm306 = vcmask 519168
    %307 = vst.msk [vmem:[#allocation2] sm:$0xf] %vm306, %v305
    %v308 = vld [vmem:[%s83] sm:$0xf]
    %v309 = vld [vmem:[%s83 + $0x4] sm:$0x1]
    %s310 = scalar_lea.vmem %s0, 16
    %v311 = vld [vmem:[%s310] sm:$0xf]
    %v312 = vld [vmem:[%s310 + $0x4] sm:$0x1]
    %v315 = vunpack.c.l.b16 %v311
    %v316 = vunpack.c.l.b16 %v312
    %v317 = vpack.c.b16 %v316, %v315
    %v319 = vsel %vm115, %v317, 0
    %321 = vmatpush.bf16.msra.mxu0 0
    %322 = vmatpush.bf16.msra.mxu0 0
    %323 = vmatpush.bf16.msra.mxu0 0
    %324 = vmatpush.bf16.msra.mxu0 0
    %325 = vmatpush.bf16.msra.mxu0 %v110
    %326 = vmatpush.bf16.msra.mxu0 %v109
    %327 = vmatpush.bf16.msra.mxu0 %v108
    %328 = vmatpush.bf16.msra.mxu0 %v107
    %329 = vmatmul.bf16.gmra.mxu0 %v319
    %v330 = vpop.f32.mrf.mxu0
    %v331 = vadd.f32 0.0, %v330
    %v332 = vpop.f32.mrf.mxu0
    %333 = vdwg.mxu0
    %v336 = vunpack.c.l.b16 %v308
    %v337 = vunpack.c.l.b16 %v309
    %v338 = vpack.c.b16 %v337, %v336
    %340 = vmatpush.bf16.msra.mxu0 %v177
    %341 = vmatpush.bf16.msra.mxu0 %v176
    %342 = vmatpush.bf16.msra.mxu0 %v175
    %343 = vmatpush.bf16.msra.mxu0 %v174
    %344 = vmatpush.bf16.msra.mxu0 %v173
    %345 = vmatpush.bf16.msra.mxu0 %v172
    %346 = vmatpush.bf16.msra.mxu0 %v171
    %347 = vmatpush.bf16.msra.mxu0 %v170
    %348 = vmatmul.bf16.gmra.mxu0 %v338
    %v349 = vpop.f32.mrf.mxu0
    %v350 = vadd.f32 %v331, %v349
    %v351 = vpop.f32.mrf.mxu0
    %352 = vdwg.mxu0
    %353 = vrot.lane.b32.xlu0 %v338, 64
    %v354 = vpop.permute.xlu0 %353
    %v356 = vsel %vm213, %v354, 0
    %358 = vmatpush.bf16.msra.mxu0 0
    %359 = vmatpush.bf16.msra.mxu0 0
    %360 = vmatpush.bf16.msra.mxu0 0
    %361 = vmatpush.bf16.msra.mxu0 0
    %362 = vmatpush.bf16.msra.mxu0 0
    %363 = vmatpush.bf16.msra.mxu0 0
    %364 = vmatpush.bf16.msra.mxu0 %v210
    %365 = vmatpush.bf16.msra.mxu0 %v209
    %366 = vmatmul.bf16.gmra.mxu0 %v356
    %v367 = vpop.f32.mrf.mxu0
    %v368 = vadd.f32 0.0, %v367
    %v369 = vpop.f32.mrf.mxu0
    %v370 = vadd.f32 0.0, %v369
    %371 = vdwg.mxu0
    %v373 = vsel %vm213, %v338, 0
    %375 = vmatpush.bf16.msra.mxu0 0
    %376 = vmatpush.bf16.msra.mxu0 0
    %377 = vmatpush.bf16.msra.mxu0 0
    %378 = vmatpush.bf16.msra.mxu0 0
    %379 = vmatpush.bf16.msra.mxu0 0
    %380 = vmatpush.bf16.msra.mxu0 0
    %381 = vmatpush.bf16.msra.mxu0 %v240
    %382 = vmatpush.bf16.msra.mxu0 %v239
    %383 = vmatmul.bf16.gmra.mxu0 %v373
    %v384 = vpop.f32.mrf.mxu0
    %v385 = vadd.f32 %v368, %v384
    %v386 = vpop.f32.mrf.mxu0
    %v387 = vadd.f32 %v370, %v386
    %388 = vdwg.mxu0
    %v389 = vsel %vm213, %v317, 0
    %391 = vmatpush.bf16.msra.mxu0 0
    %392 = vmatpush.bf16.msra.mxu0 0
    %393 = vmatpush.bf16.msra.mxu0 0
    %394 = vmatpush.bf16.msra.mxu0 0
    %395 = vmatpush.bf16.msra.mxu0 0
    %396 = vmatpush.bf16.msra.mxu0 0
    %397 = vmatpush.bf16.msra.mxu0 %v269
    %398 = vmatpush.bf16.msra.mxu0 %v268
    %399 = vmatmul.bf16.gmra.mxu0 %v389
    %v400 = vpop.f32.mrf.mxu0
    %v401 = vadd.f32 0.0, %v400
    %v402 = vpop.f32.mrf.mxu0
    %v403 = vadd.f32 0.0, %v402
    %404 = vdwg.mxu0
    %v405 = vadd.f32 %v385, %v401
    %v406 = vadd.f32 %v387, %v403
    %v409 = vrot.slane %v405, 1
    %v410 = vrot.slane %v406, 1
    %v411 = vsel %vm292, %v409, %v410
    %v413 = vadd.f32 %v350, %v411
    %v414 = vadd.f32 %v413, %v299
    %vm415 = vcmp.ge.f32.partialorder %v414, 0.0
    %v416 = vmul.f32 %v414, 0.2
    %v417 = vsel %vm415, %v414, %v416
    %v418 = vpack.c.bf16 %v417, %v417
    %s419 = scalar_lea.vmem [#allocation2], 4
    %420 = vst.msk [vmem:[%s419] sm:$0xf] %vm306, %v418
    %v421 = vld [vmem:[%s310] sm:$0xf]
    %v422 = vld [vmem:[%s310 + $0x4] sm:$0x1]
    %s423 = scalar_lea.vmem %s0, 24
    %v424 = vld [vmem:[%s423] sm:$0xf]
    %v425 = vld [vmem:[%s423 + $0x4] sm:$0x1]
    %v428 = vunpack.c.l.b16 %v424
    %v429 = vunpack.c.l.b16 %v425
    %v430 = vpack.c.b16 %v429, %v428
    %v432 = vsel %vm115, %v430, 0
    %434 = vmatpush.bf16.msra.mxu0 0
    %435 = vmatpush.bf16.msra.mxu0 0
    %436 = vmatpush.bf16.msra.mxu0 0
    %437 = vmatpush.bf16.msra.mxu0 0
    %438 = vmatpush.bf16.msra.mxu0 %v110
    %439 = vmatpush.bf16.msra.mxu0 %v109
    %440 = vmatpush.bf16.msra.mxu0 %v108
    %441 = vmatpush.bf16.msra.mxu0 %v107
    %442 = vmatmul.bf16.gmra.mxu0 %v432
    %v443 = vpop.f32.mrf.mxu0
    %v444 = vadd.f32 0.0, %v443
    %v445 = vpop.f32.mrf.mxu0
    %446 = vdwg.mxu0
    %v449 = vunpack.c.l.b16 %v421
    %v450 = vunpack.c.l.b16 %v422
    %v451 = vpack.c.b16 %v450, %v449
    %453 = vmatpush.bf16.msra.mxu0 %v177
    %454 = vmatpush.bf16.msra.mxu0 %v176
    %455 = vmatpush.bf16.msra.mxu0 %v175
    %456 = vmatpush.bf16.msra.mxu0 %v174
    %457 = vmatpush.bf16.msra.mxu0 %v173
    %458 = vmatpush.bf16.msra.mxu0 %v172
    %459 = vmatpush.bf16.msra.mxu0 %v171
    %460 = vmatpush.bf16.msra.mxu0 %v170
    %461 = vmatmul.bf16.gmra.mxu0 %v451
    %v462 = vpop.f32.mrf.mxu0
    %v463 = vadd.f32 %v444, %v462
    %v464 = vpop.f32.mrf.mxu0
    %465 = vdwg.mxu0
    %466 = vrot.lane.b32.xlu0 %v451, 64
    %v467 = vpop.permute.xlu0 %466
    %v469 = vsel %vm213, %v467, 0
    %471 = vmatpush.bf16.msra.mxu0 0
    %472 = vmatpush.bf16.msra.mxu0 0
    %473 = vmatpush.bf16.msra.mxu0 0
    %474 = vmatpush.bf16.msra.mxu0 0
    %475 = vmatpush.bf16.msra.mxu0 0
    %476 = vmatpush.bf16.msra.mxu0 0
    %477 = vmatpush.bf16.msra.mxu0 %v210
    %478 = vmatpush.bf16.msra.mxu0 %v209
    %479 = vmatmul.bf16.gmra.mxu0 %v469
    %v480 = vpop.f32.mrf.mxu0
    %v481 = vadd.f32 0.0, %v480
    %v482 = vpop.f32.mrf.mxu0
    %v483 = vadd.f32 0.0, %v482
    %484 = vdwg.mxu0
    %v486 = vsel %vm213, %v451, 0
    %488 = vmatpush.bf16.msra.mxu0 0
    %489 = vmatpush.bf16.msra.mxu0 0
    %490 = vmatpush.bf16.msra.mxu0 0
    %491 = vmatpush.bf16.msra.mxu0 0
    %492 = vmatpush.bf16.msra.mxu0 0
    %493 = vmatpush.bf16.msra.mxu0 0
    %494 = vmatpush.bf16.msra.mxu0 %v240
    %495 = vmatpush.bf16.msra.mxu0 %v239
    %496 = vmatmul.bf16.gmra.mxu0 %v486
    %v497 = vpop.f32.mrf.mxu0
    %v498 = vadd.f32 %v481, %v497
    %v499 = vpop.f32.mrf.mxu0
    %v500 = vadd.f32 %v483, %v499
    %501 = vdwg.mxu0
    %v502 = vsel %vm213, %v430, 0
    %504 = vmatpush.bf16.msra.mxu0 0
    %505 = vmatpush.bf16.msra.mxu0 0
    %506 = vmatpush.bf16.msra.mxu0 0
    %507 = vmatpush.bf16.msra.mxu0 0
    %508 = vmatpush.bf16.msra.mxu0 0
    %509 = vmatpush.bf16.msra.mxu0 0
    %510 = vmatpush.bf16.msra.mxu0 %v269
    %511 = vmatpush.bf16.msra.mxu0 %v268
    %512 = vmatmul.bf16.gmra.mxu0 %v502
    %v513 = vpop.f32.mrf.mxu0
    %v514 = vadd.f32 0.0, %v513
    %v515 = vpop.f32.mrf.mxu0
    %v516 = vadd.f32 0.0, %v515
    %517 = vdwg.mxu0
    %v518 = vadd.f32 %v498, %v514
    %v519 = vadd.f32 %v500, %v516
    %v522 = vrot.slane %v518, 1
    %v523 = vrot.slane %v519, 1
    %v524 = vsel %vm292, %v522, %v523
    %v526 = vadd.f32 %v463, %v524
    %v527 = vadd.f32 %v526, %v299
    %vm528 = vcmp.ge.f32.partialorder %v527, 0.0
    %v529 = vmul.f32 %v527, 0.2
    %v530 = vsel %vm528, %v527, %v529
    %v531 = vpack.c.bf16 %v530, %v530
    %s532 = scalar_lea.vmem [#allocation2], 8
    %533 = vst.msk [vmem:[%s532] sm:$0xf] %vm306, %v531
    %v534 = vld [vmem:[%s423] sm:$0xf]
    %v535 = vld [vmem:[%s423 + $0x4] sm:$0x1]
    %s536 = scalar_lea.vmem %s0, 32
    %v537 = vld [vmem:[%s536] sm:$0xf]
    %v538 = vld [vmem:[%s536 + $0x4] sm:$0x1]
    %v541 = vunpack.c.l.b16 %v537
    %v542 = vunpack.c.l.b16 %v538
    %v543 = vpack.c.b16 %v542, %v541
    %v545 = vsel %vm115, %v543, 0
    %547 = vmatpush.bf16.msra.mxu0 0
    %548 = vmatpush.bf16.msra.mxu0 0
    %549 = vmatpush.bf16.msra.mxu0 0
    %550 = vmatpush.bf16.msra.mxu0 0
    %551 = vmatpush.bf16.msra.mxu0 %v110
    %552 = vmatpush.bf16.msra.mxu0 %v109
    %553 = vmatpush.bf16.msra.mxu0 %v108
    %554 = vmatpush.bf16.msra.mxu0 %v107
    %555 = vmatmul.bf16.gmra.mxu0 %v545
    %v556 = vpop.f32.mrf.mxu0
    %v557 = vadd.f32 0.0, %v556
    %v558 = vpop.f32.mrf.mxu0
    %559 = vdwg.mxu0
    %v562 = vunpack.c.l.b16 %v534
    %v563 = vunpack.c.l.b16 %v535
    %v564 = vpack.c.b16 %v563, %v562
    %566 = vmatpush.bf16.msra.mxu0 %v177
    %567 = vmatpush.bf16.msra.mxu0 %v176
    %568 = vmatpush.bf16.msra.mxu0 %v175
    %569 = vmatpush.bf16.msra.mxu0 %v174
    %570 = vmatpush.bf16.msra.mxu0 %v173
    %571 = vmatpush.bf16.msra.mxu0 %v172
    %572 = vmatpush.bf16.msra.mxu0 %v171
    %573 = vmatpush.bf16.msra.mxu0 %v170
    %574 = vmatmul.bf16.gmra.mxu0 %v564
    %v575 = vpop.f32.mrf.mxu0
    %v576 = vadd.f32 %v557, %v575
    %v577 = vpop.f32.mrf.mxu0
    %578 = vdwg.mxu0
    %579 = vrot.lane.b32.xlu0 %v564, 64
    %v580 = vpop.permute.xlu0 %579
    %v582 = vsel %vm213, %v580, 0
    %584 = vmatpush.bf16.msra.mxu0 0
    %585 = vmatpush.bf16.msra.mxu0 0
    %586 = vmatpush.bf16.msra.mxu0 0
    %587 = vmatpush.bf16.msra.mxu0 0
    %588 = vmatpush.bf16.msra.mxu0 0
    %589 = vmatpush.bf16.msra.mxu0 0
    %590 = vmatpush.bf16.msra.mxu0 %v210
    %591 = vmatpush.bf16.msra.mxu0 %v209
    %592 = vmatmul.bf16.gmra.mxu0 %v582
    %v593 = vpop.f32.mrf.mxu0
    %v594 = vadd.f32 0.0, %v593
    %v595 = vpop.f32.mrf.mxu0
    %v596 = vadd.f32 0.0, %v595
    %597 = vdwg.mxu0
    %v599 = vsel %vm213, %v564, 0
    %601 = vmatpush.bf16.msra.mxu0 0
    %602 = vmatpush.bf16.msra.mxu0 0
    %603 = vmatpush.bf16.msra.mxu0 0
    %604 = vmatpush.bf16.msra.mxu0 0
    %605 = vmatpush.bf16.msra.mxu0 0
    %606 = vmatpush.bf16.msra.mxu0 0
    %607 = vmatpush.bf16.msra.mxu0 %v240
    %608 = vmatpush.bf16.msra.mxu0 %v239
    %609 = vmatmul.bf16.gmra.mxu0 %v599
    %v610 = vpop.f32.mrf.mxu0
    %v611 = vadd.f32 %v594, %v610
    %v612 = vpop.f32.mrf.mxu0
    %v613 = vadd.f32 %v596, %v612
    %614 = vdwg.mxu0
    %v615 = vsel %vm213, %v543, 0
    %617 = vmatpush.bf16.msra.mxu0 0
    %618 = vmatpush.bf16.msra.mxu0 0
    %619 = vmatpush.bf16.msra.mxu0 0
    %620 = vmatpush.bf16.msra.mxu0 0
    %621 = vmatpush.bf16.msra.mxu0 0
    %622 = vmatpush.bf16.msra.mxu0 0
    %623 = vmatpush.bf16.msra.mxu0 %v269
    %624 = vmatpush.bf16.msra.mxu0 %v268
    %625 = vmatmul.bf16.gmra.mxu0 %v615
    %v626 = vpop.f32.mrf.mxu0
    %v627 = vadd.f32 0.0, %v626
    %v628 = vpop.f32.mrf.mxu0
    %v629 = vadd.f32 0.0, %v628
    %630 = vdwg.mxu0
    %v631 = vadd.f32 %v611, %v627
    %v632 = vadd.f32 %v613, %v629
    %v635 = vrot.slane %v631, 1
    %v636 = vrot.slane %v632, 1
    %v637 = vsel %vm292, %v635, %v636
    %v639 = vadd.f32 %v576, %v637
    %v640 = vadd.f32 %v639, %v299
    %vm641 = vcmp.ge.f32.partialorder %v640, 0.0
    %v642 = vmul.f32 %v640, 0.2
    %v643 = vsel %vm641, %v640, %v642
    %v644 = vpack.c.bf16 %v643, %v643
    %s645 = scalar_lea.vmem [#allocation2], 12
    %646 = vst.msk [vmem:[%s645] sm:$0xf] %vm306, %v644
    %v647 = vld [vmem:[%s536] sm:$0xf]
    %v648 = vld [vmem:[%s536 + $0x4] sm:$0x1]
    %s649 = scalar_lea.vmem %s0, 40
    %v650 = vld [vmem:[%s649] sm:$0xf]
    %v651 = vld [vmem:[%s649 + $0x4] sm:$0x1]
    %v654 = vunpack.c.l.b16 %v650
    %v655 = vunpack.c.l.b16 %v651
    %v656 = vpack.c.b16 %v655, %v654
    %v658 = vsel %vm115, %v656, 0
    %660 = vmatpush.bf16.msra.mxu0 0
    %661 = vmatpush.bf16.msra.mxu0 0
    %662 = vmatpush.bf16.msra.mxu0 0
    %663 = vmatpush.bf16.msra.mxu0 0
    %664 = vmatpush.bf16.msra.mxu0 %v110
    %665 = vmatpush.bf16.msra.mxu0 %v109
    %666 = vmatpush.bf16.msra.mxu0 %v108
    %667 = vmatpush.bf16.msra.mxu0 %v107
    %668 = vmatmul.bf16.gmra.mxu0 %v658
    %v669 = vpop.f32.mrf.mxu0
    %v670 = vadd.f32 0.0, %v669
    %v671 = vpop.f32.mrf.mxu0
    %672 = vdwg.mxu0
    %v675 = vunpack.c.l.b16 %v647
    %v676 = vunpack.c.l.b16 %v648
    %v677 = vpack.c.b16 %v676, %v675
    %679 = vmatpush.bf16.msra.mxu0 %v177
    %680 = vmatpush.bf16.msra.mxu0 %v176
    %681 = vmatpush.bf16.msra.mxu0 %v175
    %682 = vmatpush.bf16.msra.mxu0 %v174
    %683 = vmatpush.bf16.msra.mxu0 %v173
    %684 = vmatpush.bf16.msra.mxu0 %v172
    %685 = vmatpush.bf16.msra.mxu0 %v171
    %686 = vmatpush.bf16.msra.mxu0 %v170
    %687 = vmatmul.bf16.gmra.mxu0 %v677
    %v688 = vpop.f32.mrf.mxu0
    %v689 = vadd.f32 %v670, %v688
    %v690 = vpop.f32.mrf.mxu0
    %691 = vdwg.mxu0
    %692 = vrot.lane.b32.xlu0 %v677, 64
    %v693 = vpop.permute.xlu0 %692
    %v695 = vsel %vm213, %v693, 0
    %697 = vmatpush.bf16.msra.mxu0 0
    %698 = vmatpush.bf16.msra.mxu0 0
    %699 = vmatpush.bf16.msra.mxu0 0
    %700 = vmatpush.bf16.msra.mxu0 0
    %701 = vmatpush.bf16.msra.mxu0 0
    %702 = vmatpush.bf16.msra.mxu0 0
    %703 = vmatpush.bf16.msra.mxu0 %v210
    %704 = vmatpush.bf16.msra.mxu0 %v209
    %705 = vmatmul.bf16.gmra.mxu0 %v695
    %v706 = vpop.f32.mrf.mxu0
    %v707 = vadd.f32 0.0, %v706
    %v708 = vpop.f32.mrf.mxu0
    %v709 = vadd.f32 0.0, %v708
    %710 = vdwg.mxu0
    %v712 = vsel %vm213, %v677, 0
    %714 = vmatpush.bf16.msra.mxu0 0
    %715 = vmatpush.bf16.msra.mxu0 0
    %716 = vmatpush.bf16.msra.mxu0 0
    %717 = vmatpush.bf16.msra.mxu0 0
    %718 = vmatpush.bf16.msra.mxu0 0
    %719 = vmatpush.bf16.msra.mxu0 0
    %720 = vmatpush.bf16.msra.mxu0 %v240
    %721 = vmatpush.bf16.msra.mxu0 %v239
    %722 = vmatmul.bf16.gmra.mxu0 %v712
    %v723 = vpop.f32.mrf.mxu0
    %v724 = vadd.f32 %v707, %v723
    %v725 = vpop.f32.mrf.mxu0
    %v726 = vadd.f32 %v709, %v725
    %727 = vdwg.mxu0
    %v728 = vsel %vm213, %v656, 0
    %730 = vmatpush.bf16.msra.mxu0 0
    %731 = vmatpush.bf16.msra.mxu0 0
    %732 = vmatpush.bf16.msra.mxu0 0
    %733 = vmatpush.bf16.msra.mxu0 0
    %734 = vmatpush.bf16.msra.mxu0 0
    %735 = vmatpush.bf16.msra.mxu0 0
    %736 = vmatpush.bf16.msra.mxu0 %v269
    %737 = vmatpush.bf16.msra.mxu0 %v268
    %738 = vmatmul.bf16.gmra.mxu0 %v728
    %v739 = vpop.f32.mrf.mxu0
    %v740 = vadd.f32 0.0, %v739
    %v741 = vpop.f32.mrf.mxu0
    %v742 = vadd.f32 0.0, %v741
    %743 = vdwg.mxu0
    %v744 = vadd.f32 %v724, %v740
    %v745 = vadd.f32 %v726, %v742
    %v748 = vrot.slane %v744, 1
    %v749 = vrot.slane %v745, 1
    %v750 = vsel %vm292, %v748, %v749
    %v752 = vadd.f32 %v689, %v750
    %v753 = vadd.f32 %v752, %v299
    %vm754 = vcmp.ge.f32.partialorder %v753, 0.0
    %v755 = vmul.f32 %v753, 0.2
    %v756 = vsel %vm754, %v753, %v755
    %v757 = vpack.c.bf16 %v756, %v756
    %s758 = scalar_lea.vmem [#allocation2], 16
    %759 = vst.msk [vmem:[%s758] sm:$0xf] %vm306, %v757
    %v760 = vld [vmem:[%s649] sm:$0xf]
    %v761 = vld [vmem:[%s649 + $0x4] sm:$0x1]
    %s762 = scalar_lea.vmem %s0, 48
    %v763 = vld [vmem:[%s762] sm:$0xf]
    %v764 = vld [vmem:[%s762 + $0x4] sm:$0x1]
    %v767 = vunpack.c.l.b16 %v763
    %v768 = vunpack.c.l.b16 %v764
    %v769 = vpack.c.b16 %v768, %v767
    %v771 = vsel %vm115, %v769, 0
    %773 = vmatpush.bf16.msra.mxu0 0
    %774 = vmatpush.bf16.msra.mxu0 0
    %775 = vmatpush.bf16.msra.mxu0 0
    %776 = vmatpush.bf16.msra.mxu0 0
    %777 = vmatpush.bf16.msra.mxu0 %v110
    %778 = vmatpush.bf16.msra.mxu0 %v109
    %779 = vmatpush.bf16.msra.mxu0 %v108
    %780 = vmatpush.bf16.msra.mxu0 %v107
    %781 = vmatmul.bf16.gmra.mxu0 %v771
    %v782 = vpop.f32.mrf.mxu0
    %v783 = vadd.f32 0.0, %v782
    %v784 = vpop.f32.mrf.mxu0
    %785 = vdwg.mxu0
    %v788 = vunpack.c.l.b16 %v760
    %v789 = vunpack.c.l.b16 %v761
    %v790 = vpack.c.b16 %v789, %v788
    %792 = vmatpush.bf16.msra.mxu0 %v177
    %793 = vmatpush.bf16.msra.mxu0 %v176
    %794 = vmatpush.bf16.msra.mxu0 %v175
    %795 = vmatpush.bf16.msra.mxu0 %v174
    %796 = vmatpush.bf16.msra.mxu0 %v173
    %797 = vmatpush.bf16.msra.mxu0 %v172
    %798 = vmatpush.bf16.msra.mxu0 %v171
    %799 = vmatpush.bf16.msra.mxu0 %v170
    %800 = vmatmul.bf16.gmra.mxu0 %v790
    %v801 = vpop.f32.mrf.mxu0
    %v802 = vadd.f32 %v783, %v801
    %v803 = vpop.f32.mrf.mxu0
    %804 = vdwg.mxu0
    %805 = vrot.lane.b32.xlu0 %v790, 64
    %v806 = vpop.permute.xlu0 %805
    %v808 = vsel %vm213, %v806, 0
    %810 = vmatpush.bf16.msra.mxu0 0
    %811 = vmatpush.bf16.msra.mxu0 0
    %812 = vmatpush.bf16.msra.mxu0 0
    %813 = vmatpush.bf16.msra.mxu0 0
    %814 = vmatpush.bf16.msra.mxu0 0
    %815 = vmatpush.bf16.msra.mxu0 0
    %816 = vmatpush.bf16.msra.mxu0 %v210
    %817 = vmatpush.bf16.msra.mxu0 %v209
    %818 = vmatmul.bf16.gmra.mxu0 %v808
    %v819 = vpop.f32.mrf.mxu0
    %v820 = vadd.f32 0.0, %v819
    %v821 = vpop.f32.mrf.mxu0
    %v822 = vadd.f32 0.0, %v821
    %823 = vdwg.mxu0
    %v825 = vsel %vm213, %v790, 0
    %827 = vmatpush.bf16.msra.mxu0 0
    %828 = vmatpush.bf16.msra.mxu0 0
    %829 = vmatpush.bf16.msra.mxu0 0
    %830 = vmatpush.bf16.msra.mxu0 0
    %831 = vmatpush.bf16.msra.mxu0 0
    %832 = vmatpush.bf16.msra.mxu0 0
    %833 = vmatpush.bf16.msra.mxu0 %v240
    %834 = vmatpush.bf16.msra.mxu0 %v239
    %835 = vmatmul.bf16.gmra.mxu0 %v825
    %v836 = vpop.f32.mrf.mxu0
    %v837 = vadd.f32 %v820, %v836
    %v838 = vpop.f32.mrf.mxu0
    %v839 = vadd.f32 %v822, %v838
    %840 = vdwg.mxu0
    %v841 = vsel %vm213, %v769, 0
    %843 = vmatpush.bf16.msra.mxu0 0
    %844 = vmatpush.bf16.msra.mxu0 0
    %845 = vmatpush.bf16.msra.mxu0 0
    %846 = vmatpush.bf16.msra.mxu0 0
    %847 = vmatpush.bf16.msra.mxu0 0
    %848 = vmatpush.bf16.msra.mxu0 0
    %849 = vmatpush.bf16.msra.mxu0 %v269
    %850 = vmatpush.bf16.msra.mxu0 %v268
    %851 = vmatmul.bf16.gmra.mxu0 %v841
    %v852 = vpop.f32.mrf.mxu0
    %v853 = vadd.f32 0.0, %v852
    %v854 = vpop.f32.mrf.mxu0
    %v855 = vadd.f32 0.0, %v854
    %856 = vdwg.mxu0
    %v857 = vadd.f32 %v837, %v853
    %v858 = vadd.f32 %v839, %v855
    %v861 = vrot.slane %v857, 1
    %v862 = vrot.slane %v858, 1
    %v863 = vsel %vm292, %v861, %v862
    %v865 = vadd.f32 %v802, %v863
    %v866 = vadd.f32 %v865, %v299
    %vm867 = vcmp.ge.f32.partialorder %v866, 0.0
    %v868 = vmul.f32 %v866, 0.2
    %v869 = vsel %vm867, %v866, %v868
    %v870 = vpack.c.bf16 %v869, %v869
    %s871 = scalar_lea.vmem [#allocation2], 20
    %872 = vst.msk [vmem:[%s871] sm:$0xf] %vm306, %v870
    %v873 = vld [vmem:[%s762] sm:$0xf]
    %v874 = vld [vmem:[%s762 + $0x4] sm:$0x1]
    %s875 = scalar_lea.vmem %s0, 56
    %v876 = vld [vmem:[%s875] sm:$0xf]
    %v877 = vld [vmem:[%s875 + $0x4] sm:$0x1]
    %v880 = vunpack.c.l.b16 %v876
    %v881 = vunpack.c.l.b16 %v877
    %v882 = vpack.c.b16 %v881, %v880
    %v884 = vsel %vm115, %v882, 0
    %886 = vmatpush.bf16.msra.mxu0 0
    %887 = vmatpush.bf16.msra.mxu0 0
    %888 = vmatpush.bf16.msra.mxu0 0
    %889 = vmatpush.bf16.msra.mxu0 0
    %890 = vmatpush.bf16.msra.mxu0 %v110
    %891 = vmatpush.bf16.msra.mxu0 %v109
    %892 = vmatpush.bf16.msra.mxu0 %v108
    %893 = vmatpush.bf16.msra.mxu0 %v107
    %894 = vmatmul.bf16.gmra.mxu0 %v884
    %v895 = vpop.f32.mrf.mxu0
    %v896 = vadd.f32 0.0, %v895
    %v897 = vpop.f32.mrf.mxu0
    %898 = vdwg.mxu0
    %v901 = vunpack.c.l.b16 %v873
    %v902 = vunpack.c.l.b16 %v874
    %v903 = vpack.c.b16 %v902, %v901
    %905 = vmatpush.bf16.msra.mxu0 %v177
    %906 = vmatpush.bf16.msra.mxu0 %v176
    %907 = vmatpush.bf16.msra.mxu0 %v175
    %908 = vmatpush.bf16.msra.mxu0 %v174
    %909 = vmatpush.bf16.msra.mxu0 %v173
    %910 = vmatpush.bf16.msra.mxu0 %v172
    %911 = vmatpush.bf16.msra.mxu0 %v171
    %912 = vmatpush.bf16.msra.mxu0 %v170
    %913 = vmatmul.bf16.gmra.mxu0 %v903
    %v914 = vpop.f32.mrf.mxu0
    %v915 = vadd.f32 %v896, %v914
    %v916 = vpop.f32.mrf.mxu0
    %917 = vdwg.mxu0
    %918 = vrot.lane.b32.xlu0 %v903, 64
    %v919 = vpop.permute.xlu0 %918
    %v921 = vsel %vm213, %v919, 0
    %923 = vmatpush.bf16.msra.mxu0 0
    %924 = vmatpush.bf16.msra.mxu0 0
    %925 = vmatpush.bf16.msra.mxu0 0
    %926 = vmatpush.bf16.msra.mxu0 0
    %927 = vmatpush.bf16.msra.mxu0 0
    %928 = vmatpush.bf16.msra.mxu0 0
    %929 = vmatpush.bf16.msra.mxu0 %v210
    %930 = vmatpush.bf16.msra.mxu0 %v209
    %931 = vmatmul.bf16.gmra.mxu0 %v921
    %v932 = vpop.f32.mrf.mxu0
    %v933 = vadd.f32 0.0, %v932
    %v934 = vpop.f32.mrf.mxu0
    %v935 = vadd.f32 0.0, %v934
    %936 = vdwg.mxu0
    %v938 = vsel %vm213, %v903, 0
    %940 = vmatpush.bf16.msra.mxu0 0
    %941 = vmatpush.bf16.msra.mxu0 0
    %942 = vmatpush.bf16.msra.mxu0 0
    %943 = vmatpush.bf16.msra.mxu0 0
    %944 = vmatpush.bf16.msra.mxu0 0
    %945 = vmatpush.bf16.msra.mxu0 0
    %946 = vmatpush.bf16.msra.mxu0 %v240
    %947 = vmatpush.bf16.msra.mxu0 %v239
    %948 = vmatmul.bf16.gmra.mxu0 %v938
    %v949 = vpop.f32.mrf.mxu0
    %v950 = vadd.f32 %v933, %v949
    %v951 = vpop.f32.mrf.mxu0
    %v952 = vadd.f32 %v935, %v951
    %953 = vdwg.mxu0
    %v954 = vsel %vm213, %v882, 0
    %956 = vmatpush.bf16.msra.mxu0 0
    %957 = vmatpush.bf16.msra.mxu0 0
    %958 = vmatpush.bf16.msra.mxu0 0
    %959 = vmatpush.bf16.msra.mxu0 0
    %960 = vmatpush.bf16.msra.mxu0 0
    %961 = vmatpush.bf16.msra.mxu0 0
    %962 = vmatpush.bf16.msra.mxu0 %v269
    %963 = vmatpush.bf16.msra.mxu0 %v268
    %964 = vmatmul.bf16.gmra.mxu0 %v954
    %v965 = vpop.f32.mrf.mxu0
    %v966 = vadd.f32 0.0, %v965
    %v967 = vpop.f32.mrf.mxu0
    %v968 = vadd.f32 0.0, %v967
    %969 = vdwg.mxu0
    %v970 = vadd.f32 %v950, %v966
    %v971 = vadd.f32 %v952, %v968
    %v974 = vrot.slane %v970, 1
    %v975 = vrot.slane %v971, 1
    %v976 = vsel %vm292, %v974, %v975
    %v978 = vadd.f32 %v915, %v976
    %v979 = vadd.f32 %v978, %v299
    %vm980 = vcmp.ge.f32.partialorder %v979, 0.0
    %v981 = vmul.f32 %v979, 0.2
    %v982 = vsel %vm980, %v979, %v981
    %v983 = vpack.c.bf16 %v982, %v982
    %s984 = scalar_lea.vmem [#allocation2], 24
    %985 = vst.msk [vmem:[%s984] sm:$0xf] %vm306, %v983
    %v986 = vld [vmem:[%s875] sm:$0xf]
    %v987 = vld [vmem:[%s875 + $0x4] sm:$0x1]
    %v988 = vld [vmem:[%s40] sm:$0xf]
    %v989 = vld [vmem:[%s40 + $0x4] sm:$0x1]
    %v992 = vunpack.c.l.b16 %v988
    %v993 = vunpack.c.l.b16 %v989
    %v994 = vpack.c.b16 %v993, %v992
    %v996 = vsel %vm115, %v994, 0
    %998 = vmatpush.bf16.msra.mxu0 0
    %999 = vmatpush.bf16.msra.mxu0 0
    %1000 = vmatpush.bf16.msra.mxu0 0
    %1001 = vmatpush.bf16.msra.mxu0 0
    %1002 = vmatpush.bf16.msra.mxu0 %v110
    %1003 = vmatpush.bf16.msra.mxu0 %v109
    %1004 = vmatpush.bf16.msra.mxu0 %v108
    %1005 = vmatpush.bf16.msra.mxu0 %v107
    %1006 = vmatmul.bf16.gmra.mxu0 %v996
    %v1007 = vpop.f32.mrf.mxu0
    %v1008 = vadd.f32 0.0, %v1007
    %v1009 = vpop.f32.mrf.mxu0
    %1010 = vdwg.mxu0
    %v1013 = vunpack.c.l.b16 %v986
    %v1014 = vunpack.c.l.b16 %v987
    %v1015 = vpack.c.b16 %v1014, %v1013
    %1017 = vmatpush.bf16.msra.mxu0 %v177
    %1018 = vmatpush.bf16.msra.mxu0 %v176
    %1019 = vmatpush.bf16.msra.mxu0 %v175
    %1020 = vmatpush.bf16.msra.mxu0 %v174
    %1021 = vmatpush.bf16.msra.mxu0 %v173
    %1022 = vmatpush.bf16.msra.mxu0 %v172
    %1023 = vmatpush.bf16.msra.mxu0 %v171
    %1024 = vmatpush.bf16.msra.mxu0 %v170
    %1025 = vmatmul.bf16.gmra.mxu0 %v1015
    %v1026 = vpop.f32.mrf.mxu0
    %v1027 = vadd.f32 %v1008, %v1026
    %v1028 = vpop.f32.mrf.mxu0
    %1029 = vdwg.mxu0
    %1030 = vrot.lane.b32.xlu0 %v1015, 64
    %v1031 = vpop.permute.xlu0 %1030
    %v1033 = vsel %vm213, %v1031, 0
    %1035 = vmatpush.bf16.msra.mxu0 0
    %1036 = vmatpush.bf16.msra.mxu0 0
    %1037 = vmatpush.bf16.msra.mxu0 0
    %1038 = vmatpush.bf16.msra.mxu0 0
    %1039 = vmatpush.bf16.msra.mxu0 0
    %1040 = vmatpush.bf16.msra.mxu0 0
    %1041 = vmatpush.bf16.msra.mxu0 %v210
    %1042 = vmatpush.bf16.msra.mxu0 %v209
    %1043 = vmatmul.bf16.gmra.mxu0 %v1033
    %v1044 = vpop.f32.mrf.mxu0
    %v1045 = vadd.f32 0.0, %v1044
    %v1046 = vpop.f32.mrf.mxu0
    %v1047 = vadd.f32 0.0, %v1046
    %1048 = vdwg.mxu0
    %v1050 = vsel %vm213, %v1015, 0
    %1052 = vmatpush.bf16.msra.mxu0 0
    %1053 = vmatpush.bf16.msra.mxu0 0
    %1054 = vmatpush.bf16.msra.mxu0 0
    %1055 = vmatpush.bf16.msra.mxu0 0
    %1056 = vmatpush.bf16.msra.mxu0 0
    %1057 = vmatpush.bf16.msra.mxu0 0
    %1058 = vmatpush.bf16.msra.mxu0 %v240
    %1059 = vmatpush.bf16.msra.mxu0 %v239
    %1060 = vmatmul.bf16.gmra.mxu0 %v1050
    %v1061 = vpop.f32.mrf.mxu0
    %v1062 = vadd.f32 %v1045, %v1061
    %v1063 = vpop.f32.mrf.mxu0
    %v1064 = vadd.f32 %v1047, %v1063
    %1065 = vdwg.mxu0
    %v1066 = vsel %vm213, %v994, 0
    %1068 = vmatpush.bf16.msra.mxu0 0
    %1069 = vmatpush.bf16.msra.mxu0 0
    %1070 = vmatpush.bf16.msra.mxu0 0
    %1071 = vmatpush.bf16.msra.mxu0 0
    %1072 = vmatpush.bf16.msra.mxu0 0
    %1073 = vmatpush.bf16.msra.mxu0 0
    %1074 = vmatpush.bf16.msra.mxu0 %v269
    %1075 = vmatpush.bf16.msra.mxu0 %v268
    %1076 = vmatmul.bf16.gmra.mxu0 %v1066
    %v1077 = vpop.f32.mrf.mxu0
    %v1078 = vadd.f32 0.0, %v1077
    %v1079 = vpop.f32.mrf.mxu0
    %v1080 = vadd.f32 0.0, %v1079
    %1081 = vdwg.mxu0
    %v1082 = vadd.f32 %v1062, %v1078
    %v1083 = vadd.f32 %v1064, %v1080
    %v1086 = vrot.slane %v1082, 1
    %v1087 = vrot.slane %v1083, 1
    %v1088 = vsel %vm292, %v1086, %v1087
    %v1090 = vadd.f32 %v1027, %v1088
    %v1091 = vadd.f32 %v1090, %v299
    %vm1092 = vcmp.ge.f32.partialorder %v1091, 0.0
    %v1093 = vmul.f32 %v1091, 0.2
    %v1094 = vsel %vm1092, %v1091, %v1093
    %v1095 = vpack.c.bf16 %v1094, %v1094
    %s1096 = scalar_lea.vmem [#allocation2], 28
    %1097 = vst.msk [vmem:[%s1096] sm:$0xf] %vm306, %v1095
    // Predicated region
    $region18: #{tpu_custom_call.1} parent=1 // pred_check
      _
    $region19: #{tpu_custom_call.1} parent=1 // pred_check_branch
      %1099 = sbr.rel (0) target = $region21
    $region20: #{tpu_custom_call.1} parent=1 // pred_region
      %1101 = vsyncadd [#allocation3], 0
      %s1102 = sshll.u32 [#allocation2], 4
      %s1103 = int_to_ptr.vmem [resolvable:$true] %s1102
      %s1104 = sshll.u32 %s4, 4
      %s1105 = int_to_ptr.hbm [resolvable:$true] %s1104
      %1110 = dma.vmem_to_hbm [thread:$0]  %s1103, 512, %s1105, [#allocation3], 64, 64, 4
    $region21: #{tpu_custom_call.1} parent=1 // pred_fallthru
      _
    // Predicated region
    $region22: #{tpu_custom_call.1} parent=1 // pred_check
      _
    $region23: #{tpu_custom_call.1} parent=1 // pred_check_branch
      %1112 = sbr.rel (0) target = $region25
    $region24: #{tpu_custom_call.1} parent=1 // pred_region
      %1114 = dma.done [#allocation3], 512
    $region25: #{tpu_custom_call.1} parent=1 // pred_fallthru
      _
    %1115 = vsyncpa [#allocation3], 1

</llo_original>
